<compile_context>
chip_gen: v6e
topology: v6e:2x2x1
jax: 0.10.0
libtpu: 0.0.40
codegen_flags: <defaults>
</compile_context>

<pallas_src>
import jax
import jax.numpy as jnp
from jax.experimental import pallas as pl
from jax.experimental.pallas import tpu as pltpu

EPS = 1e-5


def _bn_fused(h, gamma, beta):
    """Training-mode BatchNorm folded into one scale/shift FMA (two-pass var)."""
    mean = jnp.mean(h, axis=0, keepdims=True)
    d = h - mean
    var = jnp.mean(d * d, axis=0, keepdims=True)          # biased variance
    scale = gamma * jax.lax.rsqrt(var + EPS)               # rsqrt -> EUP slot
    return d * scale + beta


def mlp_kernel(x_ref, w1_ref, p1_ref, p2_ref, p3_ref, wo_ref, bo_ref,
               w2_hbm, w3_hbm,
               out_ref,
               w2_v, w3_v, sem):
    # Kick off the two large weight DMAs immediately; w2 first so it gets the
    # DMA engine first (its wait before fc2 is the exposed one).
    cp2 = pltpu.make_async_copy(w2_hbm, w2_v, sem.at[0])
    cp3 = pltpu.make_async_copy(w3_hbm, w3_v, sem.at[1])
    cp2.start()
    cp3.start()

    x = x_ref[...]          # (B, K1) f32
    w1 = w1_ref[...]        # (K1, H1) f32

    # ---- fc1 -> relu -> bn1 (VPU only; K1=5 broadcast FMAs) -----------------
    h = p1_ref[0:1, :] + x[:, 0:1] * w1[0:1, :]
    for k in range(1, w1.shape[0]):                        # static unrolled, K1=5
        h = h + x[:, k:k + 1] * w1[k:k + 1, :]
    h = jnp.maximum(h, 0.0)
    h = _bn_fused(h, p1_ref[1:2, :], p1_ref[2:3, :])

    # ---- fc2 -> relu -> bn2 (bf16 activations x bf16 weights, f32 accum) ----
    cp2.wait()
    h = jnp.dot(h.astype(jnp.bfloat16), w2_v[...],
                preferred_element_type=jnp.float32) + p2_ref[0:1, :]
    h = jnp.maximum(h, 0.0)
    h = _bn_fused(h, p2_ref[1:2, :], p2_ref[2:3, :])

    # ---- fc3 -> relu -> bn3 -------------------------------------------------
    cp3.wait()
    h = jnp.dot(h.astype(jnp.bfloat16), w3_v[...],
                preferred_element_type=jnp.float32) + p3_ref[0:1, :]
    h = jnp.maximum(h, 0.0)
    h = _bn_fused(h, p3_ref[1:2, :], p3_ref[2:3, :])

    # ---- output linear (lane-padded to 128; padded cols are exact zeros) ----
    y = jnp.dot(h.astype(jnp.bfloat16), wo_ref[...],
                preferred_element_type=jnp.float32) + bo_ref[...]
    out_ref[...] = y.astype(out_ref.dtype)


def mlp_forward(x, params, out_features=10):
    (w1, p1, w2, p2, w3, p3, wo_pad, bo_pad) = params
    B = x.shape[0]
    k1, h1 = w1.shape
    h2 = w2.shape[1]
    h3 = w3.shape[1]
    out_pad = wo_pad.shape[1]                 # lane-dense padded width (128)

    vmem = pl.BlockSpec(memory_space=pltpu.MemorySpace.VMEM)
    hbm = pl.BlockSpec(memory_space=pl.ANY)   # raw HBM ref, manual DMA in kernel

    flops = 2 * B * (k1 * h1 + h1 * h2 + h2 * h3 + h3 * out_pad)
    bytes_accessed = sum(int(a.size) * a.dtype.itemsize
                         for a in (x, w1, p1, w2, p2, w3, p3, wo_pad, bo_pad))
    bytes_accessed += B * out_pad * 4
    cost = pl.CostEstimate(flops=flops,
                           transcendentals=h1 + h2 + h3,   # rsqrt per feature
                           bytes_accessed=bytes_accessed)

    y_pad = pl.pallas_call(
        mlp_kernel,
        out_shape=jax.ShapeDtypeStruct((B, out_pad), jnp.float32),
        in_specs=[vmem, vmem, vmem, vmem, vmem,   # x, w1, p1, p2, p3
                  vmem, vmem,                     # wo_pad, bo_pad
                  hbm, hbm],                      # w2, w3 (manual DMA)
        out_specs=vmem,
        scratch_shapes=[
            pltpu.VMEM((h1, h2), w2.dtype),       # w2 bf16 staging
            pltpu.VMEM((h2, h3), w3.dtype),       # w3 bf16 staging
            pltpu.SemaphoreType.DMA((2,)),
        ],
        cost_estimate=cost,
    )(x, w1, p1, p2, p3, wo_pad, bo_pad, w2, w3)

    return y_pad[:, :out_features]


# ----------------------------- parameter setup ------------------------------

def xavier_uniform(key, fan_in, fan_out):
    bound = (6.0 / (fan_in + fan_out)) ** 0.5
    # stored as (fan_in, fan_out) so the kernel computes x @ W
    return jax.random.uniform(key, (fan_in, fan_out), jnp.float32, -bound, bound)


def linear_bias(key, fan_in, fan_out):
    bound = 1.0 / (fan_in ** 0.5)   # PyTorch nn.Linear default bias init
    return jax.random.uniform(key, (1, fan_out), jnp.float32, -bound, bound)


def make_params(key, in_features=5, h1=256, h2=512, h3=256, out_features=10,
                out_pad=128):
    keys = jax.random.split(key, 8)
    w1 = xavier_uniform(keys[0], in_features, h1)
    b1 = linear_bias(keys[1], in_features, h1)
    w2 = xavier_uniform(keys[2], h1, h2)
    b2 = linear_bias(keys[3], h1, h2)
    w3 = xavier_uniform(keys[4], h2, h3)
    b3 = linear_bias(keys[5], h2, h3)
    wo = xavier_uniform(keys[6], h3, out_features)
    bo = linear_bias(keys[7], h3, out_features)

    # BatchNorm1d affine params at init: gamma=1, beta=0.  rows: [bias,gamma,beta]
    def slab(b, hdim):
        return jnp.concatenate(
            [b, jnp.ones((1, hdim), jnp.float32), jnp.zeros((1, hdim), jnp.float32)],
            axis=0)

    p1, p2, p3 = slab(b1, h1), slab(b2, h2), slab(b3, h3)

    # Lane-pad the output projection 10 -> 128 with zeros (lane-dense matmul/store).
    wo_pad = jnp.zeros((h3, out_pad), jnp.float32).at[:, :out_features].set(wo)
    bo_pad = jnp.zeros((1, out_pad), jnp.float32).at[:, :out_features].set(bo)

    # Large weights stored in bf16 (DMA-bound at small batch); fed straight to the
    # MXU in-kernel with f32 accumulation.
    w2 = w2.astype(jnp.bfloat16)
    w3 = w3.astype(jnp.bfloat16)
    wo_pad = wo_pad.astype(jnp.bfloat16)
    return (w1, p1, w2, p2, w3, p3, wo_pad, bo_pad)


# ------------------------------ pure-JAX reference ---------------------------

def _bn_ref(h, gamma, beta):
    mean = jnp.mean(h, axis=0, keepdims=True)
    var = jnp.mean((h - mean) ** 2, axis=0, keepdims=True)   # biased (training mode)
    return (h - mean) * jax.lax.rsqrt(var + EPS) * gamma + beta


def reference_forward(x, params, out_features=10):
    """Same math as the kernel: bf16 matmul inputs, f32 accumulation, training-mode BN."""
    (w1, p1, w2, p2, w3, p3, wo_pad, bo_pad) = params

    def mm(h, w_bf16):
        return jnp.dot(h.astype(jnp.bfloat16), w_bf16,
                       preferred_element_type=jnp.float32)

    h = jnp.maximum(x @ w1 + p1[0:1], 0.0)
    h = _bn_ref(h, p1[1:2], p1[2:3])
    h = jnp.maximum(mm(h, w2) + p2[0:1], 0.0)
    h = _bn_ref(h, p2[1:2], p2[2:3])
    h = jnp.maximum(mm(h, w3) + p3[0:1], 0.0)
    h = _bn_ref(h, p3[1:2], p3[2:3])
    y = mm(h, wo_pad) + bo_pad
    return y[:, :out_features]


if __name__ == "__main__":
    key = jax.random.PRNGKey(0)
    pkey, xkey = jax.random.split(key)

    B, IN, OUT = 8, 5, 10
    params = make_params(pkey, in_features=IN, out_features=OUT)
    x = jax.random.normal(xkey, (B, IN), jnp.float32)

    y = mlp_forward(x, params, out_features=OUT)
    y = jax.block_until_ready(y)

    y_ref = reference_forward(x, params, out_features=OUT)
    assert y.shape == (B, OUT)
    assert jnp.allclose(y, y_ref, atol=2e-3, rtol=2e-3), "mismatch vs reference"

    print("KERNEL_OK")
</pallas_src>

<mosaic_0001>
module attributes {stable_mosaic.version = 11 : i64} {
  func.func @mlp_kernel(%arg0: memref<8x5xf32, #tpu.memory_space<vmem>>, %arg1: memref<5x256xf32, #tpu.memory_space<vmem>>, %arg2: memref<3x256xf32, #tpu.memory_space<vmem>>, %arg3: memref<3x512xf32, #tpu.memory_space<vmem>>, %arg4: memref<3x256xf32, #tpu.memory_space<vmem>>, %arg5: memref<256x128xbf16, #tpu.memory_space<vmem>>, %arg6: memref<1x128xf32, #tpu.memory_space<vmem>>, %arg7: memref<256x512xbf16, #tpu.memory_space<any>>, %arg8: memref<512x256xbf16, #tpu.memory_space<any>>, %arg9: memref<8x128xf32, #tpu.memory_space<vmem>>, %arg10: memref<256x512xbf16, #tpu.memory_space<vmem>>, %arg11: memref<512x256xbf16, #tpu.memory_space<vmem>>, %arg12: memref<2x!tpu.dma_semaphore, #tpu.memory_space<semaphore_mem>>) attributes {dimension_semantics = [], scalar_prefetch = 0 : i64, scratch_operands = 3 : i64, tpu.core_type = #tpu.core_type<tc>} {
    %c0_i32 = arith.constant 0 : i32
    %0 = tpu.memref_slice %arg12[%c0_i32] : memref<2x!tpu.dma_semaphore, #tpu.memory_space<semaphore_mem>> -> memref<1x!tpu.dma_semaphore, #tpu.memory_space<semaphore_mem>>
    %1 = tpu.memref_squeeze %0 : memref<1x!tpu.dma_semaphore, #tpu.memory_space<semaphore_mem>> -> memref<!tpu.dma_semaphore, #tpu.memory_space<semaphore_mem>>
    tpu.enqueue_dma source(%arg7 : memref<256x512xbf16, #tpu.memory_space<any>>) target(%arg10 : memref<256x512xbf16, #tpu.memory_space<vmem>>) target_semaphore(%1 : memref<!tpu.dma_semaphore, #tpu.memory_space<semaphore_mem>>)
    %c1_i32 = arith.constant 1 : i32
    %2 = tpu.memref_slice %arg12[%c1_i32] : memref<2x!tpu.dma_semaphore, #tpu.memory_space<semaphore_mem>> -> memref<1x!tpu.dma_semaphore, #tpu.memory_space<semaphore_mem>>
    %3 = tpu.memref_squeeze %2 : memref<1x!tpu.dma_semaphore, #tpu.memory_space<semaphore_mem>> -> memref<!tpu.dma_semaphore, #tpu.memory_space<semaphore_mem>>
    tpu.enqueue_dma source(%arg8 : memref<512x256xbf16, #tpu.memory_space<any>>) target(%arg11 : memref<512x256xbf16, #tpu.memory_space<vmem>>) target_semaphore(%3 : memref<!tpu.dma_semaphore, #tpu.memory_space<semaphore_mem>>)
    %c0 = arith.constant 0 : index
    %c0_0 = arith.constant 0 : index
    %4 = vector.load %arg0[%c0, %c0_0] : memref<8x5xf32, #tpu.memory_space<vmem>>, vector<8x5xf32>
    %c0_1 = arith.constant 0 : index
    %c0_2 = arith.constant 0 : index
    %5 = vector.load %arg1[%c0_1, %c0_2] : memref<5x256xf32, #tpu.memory_space<vmem>>, vector<5x256xf32>
    %c0_3 = arith.constant 0 : index
    %c0_4 = arith.constant 0 : index
    %6 = vector.load %arg2[%c0_3, %c0_4] : memref<3x256xf32, #tpu.memory_space<vmem>>, vector<1x256xf32>
    %7 = vector.extract_strided_slice %4 {offsets = [0, 0], sizes = [8, 1], strides = [1, 1]} : vector<8x5xf32> to vector<8x1xf32>
    %8 = vector.extract_strided_slice %5 {offsets = [0, 0], sizes = [1, 256], strides = [1, 1]} : vector<5x256xf32> to vector<1x256xf32>
    %9 = vector.broadcast %7 : vector<8x1xf32> to vector<8x256xf32>
    %10 = vector.broadcast %8 : vector<1x256xf32> to vector<8x256xf32>
    %11 = arith.mulf %9, %10 : vector<8x256xf32>
    %12 = vector.broadcast %6 : vector<1x256xf32> to vector<8x256xf32>
    %13 = arith.addf %12, %11 : vector<8x256xf32>
    %14 = vector.extract_strided_slice %4 {offsets = [0, 1], sizes = [8, 1], strides = [1, 1]} : vector<8x5xf32> to vector<8x1xf32>
    %15 = vector.extract_strided_slice %5 {offsets = [1, 0], sizes = [1, 256], strides = [1, 1]} : vector<5x256xf32> to vector<1x256xf32>
    %16 = vector.broadcast %14 : vector<8x1xf32> to vector<8x256xf32>
    %17 = vector.broadcast %15 : vector<1x256xf32> to vector<8x256xf32>
    %18 = arith.mulf %16, %17 : vector<8x256xf32>
    %19 = arith.addf %13, %18 : vector<8x256xf32>
    %20 = vector.extract_strided_slice %4 {offsets = [0, 2], sizes = [8, 1], strides = [1, 1]} : vector<8x5xf32> to vector<8x1xf32>
    %21 = vector.extract_strided_slice %5 {offsets = [2, 0], sizes = [1, 256], strides = [1, 1]} : vector<5x256xf32> to vector<1x256xf32>
    %22 = vector.broadcast %20 : vector<8x1xf32> to vector<8x256xf32>
    %23 = vector.broadcast %21 : vector<1x256xf32> to vector<8x256xf32>
    %24 = arith.mulf %22, %23 : vector<8x256xf32>
    %25 = arith.addf %19, %24 : vector<8x256xf32>
    %26 = vector.extract_strided_slice %4 {offsets = [0, 3], sizes = [8, 1], strides = [1, 1]} : vector<8x5xf32> to vector<8x1xf32>
    %27 = vector.extract_strided_slice %5 {offsets = [3, 0], sizes = [1, 256], strides = [1, 1]} : vector<5x256xf32> to vector<1x256xf32>
    %28 = vector.broadcast %26 : vector<8x1xf32> to vector<8x256xf32>
    %29 = vector.broadcast %27 : vector<1x256xf32> to vector<8x256xf32>
    %30 = arith.mulf %28, %29 : vector<8x256xf32>
    %31 = arith.addf %25, %30 : vector<8x256xf32>
    %32 = vector.extract_strided_slice %4 {offsets = [0, 4], sizes = [8, 1], strides = [1, 1]} : vector<8x5xf32> to vector<8x1xf32>
    %33 = vector.extract_strided_slice %5 {offsets = [4, 0], sizes = [1, 256], strides = [1, 1]} : vector<5x256xf32> to vector<1x256xf32>
    %34 = vector.broadcast %32 : vector<8x1xf32> to vector<8x256xf32>
    %35 = vector.broadcast %33 : vector<1x256xf32> to vector<8x256xf32>
    %36 = arith.mulf %34, %35 : vector<8x256xf32>
    %37 = arith.addf %31, %36 : vector<8x256xf32>
    %cst = arith.constant 0.000000e+00 : f32
    %38 = vector.broadcast %cst : f32 to vector<8x256xf32>
    %39 = arith.maximumf %37, %38 : vector<8x256xf32>
    %c1 = arith.constant 1 : index
    %c0_5 = arith.constant 0 : index
    %40 = vector.load %arg2[%c1, %c0_5] : memref<3x256xf32, #tpu.memory_space<vmem>>, vector<1x256xf32>
    %c2 = arith.constant 2 : index
    %c0_6 = arith.constant 0 : index
    %41 = vector.load %arg2[%c2, %c0_6] : memref<3x256xf32, #tpu.memory_space<vmem>>, vector<1x256xf32>
    %cst_7 = arith.constant dense<0.000000e+00> : vector<256xf32>
    %42 = vector.multi_reduction <add>, %39, %cst_7 [0] : vector<8x256xf32> to vector<256xf32>
    %43 = vector.shape_cast %42 : vector<256xf32> to vector<1x256xf32>
    %cst_8 = arith.constant 8.000000e+00 : f32
    %44 = vector.broadcast %cst_8 : f32 to vector<1x256xf32>
    %45 = arith.divf %43, %44 : vector<1x256xf32>
    %46 = vector.broadcast %45 : vector<1x256xf32> to vector<8x256xf32>
    %47 = arith.subf %39, %46 : vector<8x256xf32>
    %48 = arith.mulf %47, %47 : vector<8x256xf32>
    %cst_9 = arith.constant dense<0.000000e+00> : vector<256xf32>
    %49 = vector.multi_reduction <add>, %48, %cst_9 [0] : vector<8x256xf32> to vector<256xf32>
    %50 = vector.shape_cast %49 : vector<256xf32> to vector<1x256xf32>
    %cst_10 = arith.constant 8.000000e+00 : f32
    %51 = vector.broadcast %cst_10 : f32 to vector<1x256xf32>
    %52 = arith.divf %50, %51 : vector<1x256xf32>
    %cst_11 = arith.constant 9.99999974E-6 : f32
    %53 = vector.broadcast %cst_11 : f32 to vector<1x256xf32>
    %54 = arith.addf %52, %53 : vector<1x256xf32>
    %55 = math.rsqrt %54 : vector<1x256xf32>
    %56 = arith.mulf %40, %55 : vector<1x256xf32>
    %57 = vector.broadcast %56 : vector<1x256xf32> to vector<8x256xf32>
    %58 = arith.mulf %47, %57 : vector<8x256xf32>
    %59 = vector.broadcast %41 : vector<1x256xf32> to vector<8x256xf32>
    %60 = arith.addf %58, %59 : vector<8x256xf32>
    %c0_i32_12 = arith.constant 0 : i32
    %61 = tpu.memref_slice %arg12[%c0_i32_12] : memref<2x!tpu.dma_semaphore, #tpu.memory_space<semaphore_mem>> -> memref<1x!tpu.dma_semaphore, #tpu.memory_space<semaphore_mem>>
    %62 = tpu.memref_squeeze %61 : memref<1x!tpu.dma_semaphore, #tpu.memory_space<semaphore_mem>> -> memref<!tpu.dma_semaphore, #tpu.memory_space<semaphore_mem>>
    tpu.wait_dma2 semaphore(%62 : memref<!tpu.dma_semaphore, #tpu.memory_space<semaphore_mem>>) src(%arg7 : memref<256x512xbf16, #tpu.memory_space<any>>) dst(%arg10 : memref<256x512xbf16, #tpu.memory_space<vmem>>)
    %63 = arith.truncf %60 : vector<8x256xf32> to vector<8x256xbf16>
    %c0_13 = arith.constant 0 : index
    %c0_14 = arith.constant 0 : index
    %64 = vector.load %arg10[%c0_13, %c0_14] : memref<256x512xbf16, #tpu.memory_space<vmem>>, vector<256x512xbf16>
    %cst_15 = arith.constant dense<0.000000e+00> : vector<8x512xf32>
    %65 = tpu.matmul %63, %64, %cst_15 {dimension_numbers = #tpu.dot_dimension_numbers<[1], [0], [0], [1], [0, 0, 1, 1], [], []>} : vector<8x256xbf16>, vector<256x512xbf16>, vector<8x512xf32> -> vector<8x512xf32>
    %c0_16 = arith.constant 0 : index
    %c0_17 = arith.constant 0 : index
    %66 = vector.load %arg3[%c0_16, %c0_17] : memref<3x512xf32, #tpu.memory_space<vmem>>, vector<1x512xf32>
    %67 = vector.broadcast %66 : vector<1x512xf32> to vector<8x512xf32>
    %68 = arith.addf %65, %67 : vector<8x512xf32>
    %cst_18 = arith.constant 0.000000e+00 : f32
    %69 = vector.broadcast %cst_18 : f32 to vector<8x512xf32>
    %70 = arith.maximumf %68, %69 : vector<8x512xf32>
    %c1_19 = arith.constant 1 : index
    %c0_20 = arith.constant 0 : index
    %71 = vector.load %arg3[%c1_19, %c0_20] : memref<3x512xf32, #tpu.memory_space<vmem>>, vector<1x512xf32>
    %c2_21 = arith.constant 2 : index
    %c0_22 = arith.constant 0 : index
    %72 = vector.load %arg3[%c2_21, %c0_22] : memref<3x512xf32, #tpu.memory_space<vmem>>, vector<1x512xf32>
    %cst_23 = arith.constant dense<0.000000e+00> : vector<512xf32>
    %73 = vector.multi_reduction <add>, %70, %cst_23 [0] : vector<8x512xf32> to vector<512xf32>
    %74 = vector.shape_cast %73 : vector<512xf32> to vector<1x512xf32>
    %cst_24 = arith.constant 8.000000e+00 : f32
    %75 = vector.broadcast %cst_24 : f32 to vector<1x512xf32>
    %76 = arith.divf %74, %75 : vector<1x512xf32>
    %77 = vector.broadcast %76 : vector<1x512xf32> to vector<8x512xf32>
    %78 = arith.subf %70, %77 : vector<8x512xf32>
    %79 = arith.mulf %78, %78 : vector<8x512xf32>
    %cst_25 = arith.constant dense<0.000000e+00> : vector<512xf32>
    %80 = vector.multi_reduction <add>, %79, %cst_25 [0] : vector<8x512xf32> to vector<512xf32>
    %81 = vector.shape_cast %80 : vector<512xf32> to vector<1x512xf32>
    %cst_26 = arith.constant 8.000000e+00 : f32
    %82 = vector.broadcast %cst_26 : f32 to vector<1x512xf32>
    %83 = arith.divf %81, %82 : vector<1x512xf32>
    %cst_27 = arith.constant 9.99999974E-6 : f32
    %84 = vector.broadcast %cst_27 : f32 to vector<1x512xf32>
    %85 = arith.addf %83, %84 : vector<1x512xf32>
    %86 = math.rsqrt %85 : vector<1x512xf32>
    %87 = arith.mulf %71, %86 : vector<1x512xf32>
    %88 = vector.broadcast %87 : vector<1x512xf32> to vector<8x512xf32>
    %89 = arith.mulf %78, %88 : vector<8x512xf32>
    %90 = vector.broadcast %72 : vector<1x512xf32> to vector<8x512xf32>
    %91 = arith.addf %89, %90 : vector<8x512xf32>
    %c1_i32_28 = arith.constant 1 : i32
    %92 = tpu.memref_slice %arg12[%c1_i32_28] : memref<2x!tpu.dma_semaphore, #tpu.memory_space<semaphore_mem>> -> memref<1x!tpu.dma_semaphore, #tpu.memory_space<semaphore_mem>>
    %93 = tpu.memref_squeeze %92 : memref<1x!tpu.dma_semaphore, #tpu.memory_space<semaphore_mem>> -> memref<!tpu.dma_semaphore, #tpu.memory_space<semaphore_mem>>
    tpu.wait_dma2 semaphore(%93 : memref<!tpu.dma_semaphore, #tpu.memory_space<semaphore_mem>>) src(%arg8 : memref<512x256xbf16, #tpu.memory_space<any>>) dst(%arg11 : memref<512x256xbf16, #tpu.memory_space<vmem>>)
    %94 = arith.truncf %91 : vector<8x512xf32> to vector<8x512xbf16>
    %c0_29 = arith.constant 0 : index
    %c0_30 = arith.constant 0 : index
    %95 = vector.load %arg11[%c0_29, %c0_30] : memref<512x256xbf16, #tpu.memory_space<vmem>>, vector<512x256xbf16>
    %cst_31 = arith.constant dense<0.000000e+00> : vector<8x256xf32>
    %96 = tpu.matmul %94, %95, %cst_31 {dimension_numbers = #tpu.dot_dimension_numbers<[1], [0], [0], [1], [0, 0, 1, 1], [], []>} : vector<8x512xbf16>, vector<512x256xbf16>, vector<8x256xf32> -> vector<8x256xf32>
    %c0_32 = arith.constant 0 : index
    %c0_33 = arith.constant 0 : index
    %97 = vector.load %arg4[%c0_32, %c0_33] : memref<3x256xf32, #tpu.memory_space<vmem>>, vector<1x256xf32>
    %98 = vector.broadcast %97 : vector<1x256xf32> to vector<8x256xf32>
    %99 = arith.addf %96, %98 : vector<8x256xf32>
    %cst_34 = arith.constant 0.000000e+00 : f32
    %100 = vector.broadcast %cst_34 : f32 to vector<8x256xf32>
    %101 = arith.maximumf %99, %100 : vector<8x256xf32>
    %c1_35 = arith.constant 1 : index
    %c0_36 = arith.constant 0 : index
    %102 = vector.load %arg4[%c1_35, %c0_36] : memref<3x256xf32, #tpu.memory_space<vmem>>, vector<1x256xf32>
    %c2_37 = arith.constant 2 : index
    %c0_38 = arith.constant 0 : index
    %103 = vector.load %arg4[%c2_37, %c0_38] : memref<3x256xf32, #tpu.memory_space<vmem>>, vector<1x256xf32>
    %cst_39 = arith.constant dense<0.000000e+00> : vector<256xf32>
    %104 = vector.multi_reduction <add>, %101, %cst_39 [0] : vector<8x256xf32> to vector<256xf32>
    %105 = vector.shape_cast %104 : vector<256xf32> to vector<1x256xf32>
    %cst_40 = arith.constant 8.000000e+00 : f32
    %106 = vector.broadcast %cst_40 : f32 to vector<1x256xf32>
    %107 = arith.divf %105, %106 : vector<1x256xf32>
    %108 = vector.broadcast %107 : vector<1x256xf32> to vector<8x256xf32>
    %109 = arith.subf %101, %108 : vector<8x256xf32>
    %110 = arith.mulf %109, %109 : vector<8x256xf32>
    %cst_41 = arith.constant dense<0.000000e+00> : vector<256xf32>
    %111 = vector.multi_reduction <add>, %110, %cst_41 [0] : vector<8x256xf32> to vector<256xf32>
    %112 = vector.shape_cast %111 : vector<256xf32> to vector<1x256xf32>
    %cst_42 = arith.constant 8.000000e+00 : f32
    %113 = vector.broadcast %cst_42 : f32 to vector<1x256xf32>
    %114 = arith.divf %112, %113 : vector<1x256xf32>
    %cst_43 = arith.constant 9.99999974E-6 : f32
    %115 = vector.broadcast %cst_43 : f32 to vector<1x256xf32>
    %116 = arith.addf %114, %115 : vector<1x256xf32>
    %117 = math.rsqrt %116 : vector<1x256xf32>
    %118 = arith.mulf %102, %117 : vector<1x256xf32>
    %119 = vector.broadcast %118 : vector<1x256xf32> to vector<8x256xf32>
    %120 = arith.mulf %109, %119 : vector<8x256xf32>
    %121 = vector.broadcast %103 : vector<1x256xf32> to vector<8x256xf32>
    %122 = arith.addf %120, %121 : vector<8x256xf32>
    %123 = arith.truncf %122 : vector<8x256xf32> to vector<8x256xbf16>
    %c0_44 = arith.constant 0 : index
    %c0_45 = arith.constant 0 : index
    %124 = vector.load %arg5[%c0_44, %c0_45] : memref<256x128xbf16, #tpu.memory_space<vmem>>, vector<256x128xbf16>
    %cst_46 = arith.constant dense<0.000000e+00> : vector<8x128xf32>
    %125 = tpu.matmul %123, %124, %cst_46 {dimension_numbers = #tpu.dot_dimension_numbers<[1], [0], [0], [1], [0, 0, 1, 1], [], []>} : vector<8x256xbf16>, vector<256x128xbf16>, vector<8x128xf32> -> vector<8x128xf32>
    %c0_47 = arith.constant 0 : index
    %c0_48 = arith.constant 0 : index
    %126 = vector.load %arg6[%c0_47, %c0_48] : memref<1x128xf32, #tpu.memory_space<vmem>>, vector<1x128xf32>
    %127 = vector.broadcast %126 : vector<1x128xf32> to vector<8x128xf32>
    %128 = arith.addf %125, %127 : vector<8x128xf32>
    %c0_49 = arith.constant 0 : index
    %c0_50 = arith.constant 0 : index
    %129 = vector.load %arg9[%c0_49, %c0_50] : memref<8x128xf32, #tpu.memory_space<vmem>>, vector<8x128xf32>
    tpu.vector_store %arg9[%c0_49, %c0_50], %128 {strides = array<i32>} : memref<8x128xf32, #tpu.memory_space<vmem>>, vector<8x128xf32>,
    return
  }
}

</mosaic_0001>

<llo_original>
// kernel: tpu_custom_call.1
$region0: #{tpu_custom_call.1}
  #allocation0 [shape = 'u32[]', space=smem, size = 0x4, offset = 0x4, fixed_abs, tag = 'smem constant byte address 0x4 - core index']
  #allocation1 [shape = 'u32[144,128]{1,0:T(1,128)}', space=vmem, size = 0x12000, scoped, tag = 'internal scratch']
  #allocation2 [shape = 'bf16[256,512]{1,0:T(8,128)(2,1)}', space=vmem, size = 0x40000, scoped, tag = 'scratch operand']
  #allocation3 [shape = 'bf16[512,256]{1,0:T(8,128)(2,1)}', space=vmem, size = 0x40000, scoped, tag = 'scratch operand']
  #allocation4 [shape = 's32[2]{0}', space=sflag, size = 0x8, scoped, tag = 'scratch operand']
  #allocation17 [shape = 's32[]', space=sflag, size = 0x4, offset = 0, fixed_abs, tag = 'sflag constant byte address 0x0 - dummy sync flag']
  #allocation18 [shape = 's32[]', space=sflag, size = 0x4, offset = 0, fixed_abs, tag = 'sflag constant byte address 0x0 - dummy sync flag']
  #allocation19 [shape = 'u32[]', space=smem, size = 0x4, offset = 0x44, fixed_abs, tag = 'smem constant byte address 0x44 - assertion arg 0']
  #allocation20 [shape = 'u32[]', space=smem, size = 0x4, offset = 0x48, fixed_abs, tag = 'smem constant byte address 0x48 - assertion arg 1']
  #allocation21 [shape = 's32[]', space=sflag, size = 0x4, offset = 0, fixed_abs, tag = 'sflag constant byte address 0x0 - dummy sync flag']
  #allocation22 [shape = 's32[]', space=sflag, size = 0x4, offset = 0, fixed_abs, tag = 'sflag constant byte address 0x0 - dummy sync flag']
  %s0 = inlined_call_operand.hbm [shape: f32[8,5], index: 0, kind: input, shape index: {}]
  %s1 = inlined_call_operand.hbm [shape: f32[5,256], index: 1, kind: input, shape index: {}]
  %s2 = inlined_call_operand.hbm [shape: f32[3,256], index: 2, kind: input, shape index: {}]
  %s3 = inlined_call_operand.hbm [shape: f32[3,512], index: 3, kind: input, shape index: {}]
  %s4 = inlined_call_operand.hbm [shape: f32[3,256], index: 4, kind: input, shape index: {}]
  %s5 = inlined_call_operand.hbm [shape: bf16[256,128], index: 5, kind: input, shape index: {}]
  %s6 = inlined_call_operand.vmem [shape: f32[1,128], index: 6, kind: input, shape index: {}]
  %s7 = inlined_call_operand.hbm [shape: bf16[256,512], index: 7, kind: input, shape index: {}]
  %s8 = inlined_call_operand.hbm [shape: bf16[512,256], index: 8, kind: input, shape index: {}]
  %s9 = inlined_call_operand.hbm [shape: f32[8,128], index: 9, kind: output, shape index: {}]
  %s10 = sld [smem:[#allocation0]]
  $region70: #{tpu_custom_call.1} parent=0
    _
  %s12 = ssub.s32 1, %s10
  %s13 = scalar_select 0, %s12, %s10
  $region1: #{tpu_custom_call.1} parent=0
    #allocation5 [shape = 'u8[4096]{0}', space=vmem, size = 0x1000, scoped, tag = 'input window, operand 0, single buffered']
    #allocation6 [shape = 's32[1]{0}', space=sflag, size = 0x4, scoped, tag = 'scoped memory for tpu_custom_call.1']
    #allocation7 [shape = 's32[1]{0}', space=sflag, size = 0x4, scoped, tag = 'scoped memory for tpu_custom_call.1']
    #allocation8 [shape = 'u8[8192]{0}', space=vmem, size = 0x2000, scoped, tag = 'input window, operand 1, single buffered']
    #allocation9 [shape = 's32[1]{0}', space=sflag, size = 0x4, scoped, tag = 'scoped memory for tpu_custom_call.1']
    #allocation10 [shape = 'u8[4096]{0}', space=vmem, size = 0x1000, scoped, tag = 'input window, operand 2, single buffered']
    #allocation11 [shape = 'u8[8192]{0}', space=vmem, size = 0x2000, scoped, tag = 'input window, operand 3, single buffered']
    #allocation12 [shape = 's32[1]{0}', space=sflag, size = 0x4, scoped, tag = 'scoped memory for tpu_custom_call.1']
    #allocation13 [shape = 'u8[4096]{0}', space=vmem, size = 0x1000, scoped, tag = 'input window, operand 4, single buffered']
    #allocation14 [shape = 'u8[65536]{0}', space=vmem, size = 0x10000, scoped, tag = 'input window, operand 5, single buffered']
    #allocation15 [shape = 's32[1]{0}', space=sflag, size = 0x4, scoped, tag = 'scoped memory for tpu_custom_call.1']
    #allocation16 [shape = 'u8[4096]{0}', space=vmem, size = 0x1000, scoped, tag = 'output window, operand 0, single buffered']
    %14 = vsyncpa [#allocation6], 0
    %15 = vsyncpa [#allocation9], 0
    %16 = vsyncpa [#allocation12], 0
    %17 = vsyncpa [#allocation15], 0
    %18 = vsyncpa [#allocation7], 0
    // Predicated region
    $region2: #{tpu_custom_call.1} parent=1 // pred_check
      _
    $region3: #{tpu_custom_call.1} parent=1 // pred_check_branch
      %20 = sbr.rel (0) target = $region5
    $region4: #{tpu_custom_call.1} parent=1 // pred_region
      %s22 = ssub.s32 128, 128
      %23 = vsyncadd [#allocation6], %s22
      %s25 = sshll.u32 [#allocation5], 4
      %s26 = int_to_ptr.vmem [resolvable:$true] %s25
      %28 = dma.hbm_to_vmem [thread:$0]  %s0, 128, %s26, [#allocation6]
    $region5: #{tpu_custom_call.1} parent=1 // pred_fallthru
      _
    // Predicated region
    $region6: #{tpu_custom_call.1} parent=1 // pred_check
      _
    $region7: #{tpu_custom_call.1} parent=1 // pred_check_branch
      %30 = sbr.rel (0) target = $region9
    $region8: #{tpu_custom_call.1} parent=1 // pred_region
      %s32 = ssub.s32 256, 256
      %33 = vsyncadd [#allocation9], %s32
      %s35 = sshll.u32 [#allocation8], 4
      %s36 = int_to_ptr.vmem [resolvable:$true] %s35
      %38 = dma.hbm_to_vmem [thread:$0]  %s1, 256, %s36, [#allocation9]
    $region9: #{tpu_custom_call.1} parent=1 // pred_fallthru
      _
    // Predicated region
    $region10: #{tpu_custom_call.1} parent=1 // pred_check
      _
    $region11: #{tpu_custom_call.1} parent=1 // pred_check_branch
      %40 = sbr.rel (0) target = $region13
    $region12: #{tpu_custom_call.1} parent=1 // pred_region
      %s42 = ssub.s32 128, 128
      %43 = vsyncadd [#allocation9], %s42
      %s45 = sshll.u32 [#allocation10], 4
      %s46 = int_to_ptr.vmem [resolvable:$true] %s45
      %48 = dma.hbm_to_vmem [thread:$0]  %s2, 128, %s46, [#allocation9]
    $region13: #{tpu_custom_call.1} parent=1 // pred_fallthru
      _
    // Predicated region
    $region14: #{tpu_custom_call.1} parent=1 // pred_check
      _
    $region15: #{tpu_custom_call.1} parent=1 // pred_check_branch
      %50 = sbr.rel (0) target = $region17
    $region16: #{tpu_custom_call.1} parent=1 // pred_region
      %s52 = ssub.s32 256, 256
      %53 = vsyncadd [#allocation12], %s52
      %s55 = sshll.u32 [#allocation11], 4
      %s56 = int_to_ptr.vmem [resolvable:$true] %s55
      %58 = dma.hbm_to_vmem [thread:$0]  %s3, 256, %s56, [#allocation12]
    $region17: #{tpu_custom_call.1} parent=1 // pred_fallthru
      _
    // Predicated region
    $region18: #{tpu_custom_call.1} parent=1 // pred_check
      _
    $region19: #{tpu_custom_call.1} parent=1 // pred_check_branch
      %60 = sbr.rel (0) target = $region21
    $region20: #{tpu_custom_call.1} parent=1 // pred_region
      %s62 = ssub.s32 128, 128
      %63 = vsyncadd [#allocation12], %s62
      %s65 = sshll.u32 [#allocation13], 4
      %s66 = int_to_ptr.vmem [resolvable:$true] %s65
      %68 = dma.hbm_to_vmem [thread:$0]  %s4, 128, %s66, [#allocation12]
    $region21: #{tpu_custom_call.1} parent=1 // pred_fallthru
      _
    // Predicated region
    $region22: #{tpu_custom_call.1} parent=1 // pred_check
      _
    $region23: #{tpu_custom_call.1} parent=1 // pred_check_branch
      %70 = sbr.rel (0) target = $region25
    $region24: #{tpu_custom_call.1} parent=1 // pred_region
      %s72 = ssub.s32 2048, 2048
      %73 = vsyncadd [#allocation15], %s72
      %s74 = sshll.u32 [#allocation14], 4
      %s75 = int_to_ptr.vmem [resolvable:$true] %s74
      %80 = dma.hbm_to_vmem [thread:$0]  %s5, 2048, %s75, [#allocation15], 64, 64, 4
    $region25: #{tpu_custom_call.1} parent=1 // pred_fallthru
      _
    // Predicated region
    $region26: #{tpu_custom_call.1} parent=1 // pred_check
      _
    $region27: #{tpu_custom_call.1} parent=1 // pred_check_branch
      %82 = sbr.rel (0) target = $region29
    $region28: #{tpu_custom_call.1} parent=1 // pred_region
      _
    $region29: #{tpu_custom_call.1} parent=1 // pred_fallthru
      _
    // Predicated region
    $region30: #{tpu_custom_call.1} parent=1 // pred_check
      _
    $region31: #{tpu_custom_call.1} parent=1 // pred_check_branch
      %84 = sbr.rel (0) target = $region33
    $region32: #{tpu_custom_call.1} parent=1 // pred_region
      %85 = dma.done [#allocation6], 128
    $region33: #{tpu_custom_call.1} parent=1 // pred_fallthru
      _
    // Predicated region
    $region34: #{tpu_custom_call.1} parent=1 // pred_check
      _
    $region35: #{tpu_custom_call.1} parent=1 // pred_check_branch
      %87 = sbr.rel (0) target = $region37
    $region36: #{tpu_custom_call.1} parent=1 // pred_region
      %88 = dma.done [#allocation9], 256
    $region37: #{tpu_custom_call.1} parent=1 // pred_fallthru
      _
    // Predicated region
    $region38: #{tpu_custom_call.1} parent=1 // pred_check
      _
    $region39: #{tpu_custom_call.1} parent=1 // pred_check_branch
      %90 = sbr.rel (0) target = $region41
    $region40: #{tpu_custom_call.1} parent=1 // pred_region
      %91 = dma.done [#allocation9], 128
    $region41: #{tpu_custom_call.1} parent=1 // pred_fallthru
      _
    // Predicated region
    $region42: #{tpu_custom_call.1} parent=1 // pred_check
      _
    $region43: #{tpu_custom_call.1} parent=1 // pred_check_branch
      %93 = sbr.rel (0) target = $region45
    $region44: #{tpu_custom_call.1} parent=1 // pred_region
      %94 = dma.done [#allocation12], 256
    $region45: #{tpu_custom_call.1} parent=1 // pred_fallthru
      _
    // Predicated region
    $region46: #{tpu_custom_call.1} parent=1 // pred_check
      _
    $region47: #{tpu_custom_call.1} parent=1 // pred_check_branch
      %96 = sbr.rel (0) target = $region49
    $region48: #{tpu_custom_call.1} parent=1 // pred_region
      %97 = dma.done [#allocation12], 128
    $region49: #{tpu_custom_call.1} parent=1 // pred_fallthru
      _
    // Predicated region
    $region50: #{tpu_custom_call.1} parent=1 // pred_check
      _
    $region51: #{tpu_custom_call.1} parent=1 // pred_check_branch
      %99 = sbr.rel (0) target = $region53
    $region52: #{tpu_custom_call.1} parent=1 // pred_region
      %100 = dma.done [#allocation15], 2048
    $region53: #{tpu_custom_call.1} parent=1 // pred_fallthru
      _
    // Predicated region
    $region54: #{tpu_custom_call.1} parent=1 // pred_check
      _
    $region55: #{tpu_custom_call.1} parent=1 // pred_check_branch
      %103 = sbr.rel target = $region57
    $region56: #{tpu_custom_call.1} parent=1 // pred_region
      %104 = sst [smem:[#allocation19]] [#allocation18]
      %105 = sst [smem:[#allocation20]] [#allocation17]
    $region57: #{tpu_custom_call.1} parent=1 // pred_fallthru
      _
    %107 = shalt.err (0)
    %s109 = sshll.u32 [#allocation2], 4
    %s110 = int_to_ptr.vmem [resolvable:$true] %s109
    %112 = dma.hbm_to_vmem [thread:$0]  %s7, 8192, %s110, [#allocation4]
    %s113 = scalar_lea.sflag [#allocation4], 1
    // Predicated region
    $region58: #{tpu_custom_call.1} parent=1 // pred_check
      _
    $region59: #{tpu_custom_call.1} parent=1 // pred_check_branch
      %115 = sbr.rel target = $region61
    $region60: #{tpu_custom_call.1} parent=1 // pred_region
      %116 = sst [smem:[#allocation19]] [#allocation22]
      %117 = sst [smem:[#allocation20]] [#allocation21]
    $region61: #{tpu_custom_call.1} parent=1 // pred_fallthru
      _
    %119 = shalt.err (0)
    %s121 = sshll.u32 [#allocation3], 4
    %s122 = int_to_ptr.vmem [resolvable:$true] %s121
    %124 = dma.hbm_to_vmem [thread:$0]  %s8, 8192, %s122, %s113
    %v125 = vld [vmem:[#allocation5] sm:$0xff]
    %v126 = vld [vmem:[#allocation8] sm:$0x1f]
    %v127 = vld [vmem:[#allocation8 + $0x8] sm:$0x1f]
    %v128 = vld [vmem:[#allocation10] ss:$4 sm:$0x3]
    %130 = vset.pattern.permute.xlu0 0
    %131 = vperm.xlu0 %130, %v125
    %v132 = vpop.permute.xlu0 %131
    %v134 = vlaneseq
    %v135 = vshrl.u32 %v134, 7
    %v136 = vsub.s32 0, %v135
    %v137 = vrot.slane %v126, %v136
    %v138 = vlaneseq
    %v139 = vshrl.u32 %v138, 7
    %v140 = vsub.s32 0, %v139
    %v141 = vrot.slane %v127, %v140
    %v142 = vmul.f32 %v132, %v137
    %v143 = vmul.f32 %v132, %v141
    %v145 = vlaneseq
    %v146 = vshrl.u32 %v145, 7
    %v147 = vsub.s32 0, %v146
    %v148 = vrot.slane %v128, %v147
    %v149 = vlaneseq
    %v150 = vshrl.u32 %v149, 7
    %v151 = vsub.s32 1, %v150
    %v152 = vrot.slane %v128, %v151
    %v155 = vadd.f32 %v148, %v142
    %v156 = vadd.f32 %v152, %v143
    %157 = vset.pattern.permute.xlu0 1
    %158 = vperm.xlu0 %157, %v125
    %v159 = vpop.permute.xlu0 %158
    %v161 = vlaneseq
    %v162 = vshrl.u32 %v161, 7
    %v163 = vsub.s32 1, %v162
    %v164 = vrot.slane %v126, %v163
    %v165 = vlaneseq
    %v166 = vshrl.u32 %v165, 7
    %v167 = vsub.s32 1, %v166
    %v168 = vrot.slane %v127, %v167
    %v169 = vmul.f32 %v159, %v164
    %v170 = vmul.f32 %v159, %v168
    %v171 = vadd.f32 %v155, %v169
    %v172 = vadd.f32 %v156, %v170
    %173 = vset.pattern.permute.xlu0 2
    %174 = vperm.xlu0 %173, %v125
    %v175 = vpop.permute.xlu0 %174
    %v177 = vlaneseq
    %v178 = vshrl.u32 %v177, 7
    %v179 = vsub.s32 2, %v178
    %v180 = vrot.slane %v126, %v179
    %v181 = vlaneseq
    %v182 = vshrl.u32 %v181, 7
    %v183 = vsub.s32 2, %v182
    %v184 = vrot.slane %v127, %v183
    %v185 = vmul.f32 %v175, %v180
    %v186 = vmul.f32 %v175, %v184
    %v187 = vadd.f32 %v171, %v185
    %v188 = vadd.f32 %v172, %v186
    %189 = vset.pattern.permute.xlu0 3
    %190 = vperm.xlu0 %189, %v125
    %v191 = vpop.permute.xlu0 %190
    %v193 = vlaneseq
    %v194 = vshrl.u32 %v193, 7
    %v195 = vsub.s32 3, %v194
    %v196 = vrot.slane %v126, %v195
    %v197 = vlaneseq
    %v198 = vshrl.u32 %v197, 7
    %v199 = vsub.s32 3, %v198
    %v200 = vrot.slane %v127, %v199
    %v201 = vmul.f32 %v191, %v196
    %v202 = vmul.f32 %v191, %v200
    %v203 = vadd.f32 %v187, %v201
    %v204 = vadd.f32 %v188, %v202
    %205 = vset.pattern.permute.xlu0 4
    %206 = vperm.xlu0 %205, %v125
    %v207 = vpop.permute.xlu0 %206
    %v209 = vlaneseq
    %v210 = vshrl.u32 %v209, 7
    %v211 = vsub.s32 4, %v210
    %v212 = vrot.slane %v126, %v211
    %v213 = vlaneseq
    %v214 = vshrl.u32 %v213, 7
    %v215 = vsub.s32 4, %v214
    %v216 = vrot.slane %v127, %v215
    %v217 = vmul.f32 %v207, %v212
    %v218 = vmul.f32 %v207, %v216
    %v219 = vadd.f32 %v203, %v217
    %v220 = vadd.f32 %v204, %v218
    %v221 = vmax.f32 %v219, 0.0
    %v222 = vmax.f32 %v220, 0.0
    %s223 = scalar_lea.vmem [#allocation10], 1
    %v224 = vld [vmem:[%s223] ss:$4 sm:$0x3]
    %s225 = scalar_lea.vmem [#allocation10], 2
    %v226 = vld [vmem:[%s225] ss:$4 sm:$0x3]
    %v227 = vrot.slane %v221, 4
    %v228 = vadd.f32 %v221, %v227
    %v229 = vrot.slane %v228, 2
    %v230 = vadd.f32 %v228, %v229
    %v231 = vrot.slane %v230, 1
    %v232 = vadd.f32 %v230, %v231
    %v233 = vrot.slane %v222, 4
    %v234 = vadd.f32 %v222, %v233
    %v235 = vrot.slane %v234, 2
    %v236 = vadd.f32 %v234, %v235
    %v237 = vrot.slane %v236, 1
    %v238 = vadd.f32 %v236, %v237
    %v239 = vrcp.pop 8.0
    %v240 = vmul.f32 %v232, %v239
    %v241 = vmul.f32 %v238, %v239
    %v242 = vsub.f32 %v221, %v240
    %v243 = vsub.f32 %v222, %v241
    %v244 = vmul.f32 %v242, %v242
    %v245 = vmul.f32 %v243, %v243
    %v246 = vrot.slane %v244, 4
    %v247 = vadd.f32 %v244, %v246
    %v248 = vrot.slane %v247, 2
    %v249 = vadd.f32 %v247, %v248
    %v250 = vrot.slane %v249, 1
    %v251 = vadd.f32 %v249, %v250
    %v252 = vrot.slane %v245, 4
    %v253 = vadd.f32 %v245, %v252
    %v254 = vrot.slane %v253, 2
    %v255 = vadd.f32 %v253, %v254
    %v256 = vrot.slane %v255, 1
    %v257 = vadd.f32 %v255, %v256
    %v258 = vmul.f32 %v251, %v239
    %v259 = vmul.f32 %v257, %v239
    %v260 = vadd.f32 %v258, 1e-05
    %v261 = vadd.f32 %v259, 1e-05
    %v262 = vrsqrt.pop %v260
    %v263 = vrsqrt.pop %v261
    %v266 = vcombine.low %v262, %v263
    %v268 = vunpack.c.l.s4 1966171168
    %v269 = vunpack.c.0.s8 %v268
    %v270 = vlaneseq
    %v271 = vshrl.u32 %v270, 7
    %v272 = vsub.s32 %v269, %v271
    %v273 = vrot.slane %v266, %v272
    %v275 = vunpack.c.l.s4 1966171168
    %v276 = vunpack.c.0.s8 %v275
    %v277 = vlaneseq
    %v278 = vshrl.u32 %v277, 7
    %v279 = vsub.s32 %v276, %v278
    %v280 = vrot.slane %v273, %v279
    %v282 = vmul.f32 %v224, %v280
    %v284 = vlaneseq
    %v285 = vshrl.u32 %v284, 7
    %v286 = vsub.s32 0, %v285
    %v287 = vrot.slane %v282, %v286
    %v288 = vlaneseq
    %v289 = vshrl.u32 %v288, 7
    %v290 = vsub.s32 1, %v289
    %v291 = vrot.slane %v282, %v290
    %v294 = vmul.f32 %v242, %v287
    %v295 = vmul.f32 %v243, %v291
    %v297 = vlaneseq
    %v298 = vshrl.u32 %v297, 7
    %v299 = vsub.s32 0, %v298
    %v300 = vrot.slane %v226, %v299
    %v301 = vlaneseq
    %v302 = vshrl.u32 %v301, 7
    %v303 = vsub.s32 1, %v302
    %v304 = vrot.slane %v226, %v303
    %v307 = vadd.f32 %v294, %v300
    %v308 = vadd.f32 %v295, %v304
    %s309 = smul.u32 4, 32
    %s310 = smul.u32 %s309, 4
    %s311 = sshll.u32 %s310, 4
    %312 = dma.done [#allocation4], %s311
    %v313 = vpack.c.bf16 %v307, %v307
    %v314 = vpack.c.bf16 %v308, %v308
    %v315 = vld [vmem:[#allocation2] sm:$0xff]
    %v316 = vld [vmem:[#allocation2 + $0x8] sm:$0xff]
    %v317 = vld [vmem:[#allocation2 + $0x10] sm:$0xff]
    %v318 = vld [vmem:[#allocation2 + $0x18] sm:$0xff]
    %v319 = vld [vmem:[#allocation2 + $0x20] sm:$0xff]
    %v320 = vld [vmem:[#allocation2 + $0x28] sm:$0xff]
    %v321 = vld [vmem:[#allocation2 + $0x30] sm:$0xff]
    %v322 = vld [vmem:[#allocation2 + $0x38] sm:$0xff]
    %v323 = vld [vmem:[#allocation2 + $0x40] sm:$0xff]
    %v324 = vld [vmem:[#allocation2 + $0x48] sm:$0xff]
    %v325 = vld [vmem:[#allocation2 + $0x50] sm:$0xff]
    %v326 = vld [vmem:[#allocation2 + $0x58] sm:$0xff]
    %v327 = vld [vmem:[#allocation2 + $0x60] sm:$0xff]
    %v328 = vld [vmem:[#allocation2 + $0x68] sm:$0xff]
    %v329 = vld [vmem:[#allocation2 + $0x70] sm:$0xff]
    %v330 = vld [vmem:[#allocation2 + $0x78] sm:$0xff]
    %v331 = vld [vmem:[#allocation2 + $0x80] sm:$0xff]
    %v332 = vld [vmem:[#allocation2 + $0x88] sm:$0xff]
    %v333 = vld [vmem:[#allocation2 + $0x90] sm:$0xff]
    %v334 = vld [vmem:[#allocation2 + $0x98] sm:$0xff]
    %v335 = vld [vmem:[#allocation2 + $0xa0] sm:$0xff]
    %v336 = vld [vmem:[#allocation2 + $0xa8] sm:$0xff]
    %v337 = vld [vmem:[#allocation2 + $0xb0] sm:$0xff]
    %v338 = vld [vmem:[#allocation2 + $0xb8] sm:$0xff]
    %v339 = vld [vmem:[#allocation2 + $0xc0] sm:$0xff]
    %v340 = vld [vmem:[#allocation2 + $0xc8] sm:$0xff]
    %v341 = vld [vmem:[#allocation2 + $0xd0] sm:$0xff]
    %v342 = vld [vmem:[#allocation2 + $0xd8] sm:$0xff]
    %v343 = vld [vmem:[#allocation2 + $0xe0] sm:$0xff]
    %v344 = vld [vmem:[#allocation2 + $0xe8] sm:$0xff]
    %v345 = vld [vmem:[#allocation2 + $0xf0] sm:$0xff]
    %v346 = vld [vmem:[#allocation2 + $0xf8] sm:$0xff]
    %v347 = vld [vmem:[#allocation2 + $0x100] sm:$0xff]
    %v348 = vld [vmem:[#allocation2 + $0x108] sm:$0xff]
    %v349 = vld [vmem:[#allocation2 + $0x110] sm:$0xff]
    %v350 = vld [vmem:[#allocation2 + $0x118] sm:$0xff]
    %v351 = vld [vmem:[#allocation2 + $0x120] sm:$0xff]
    %v352 = vld [vmem:[#allocation2 + $0x128] sm:$0xff]
    %v353 = vld [vmem:[#allocation2 + $0x130] sm:$0xff]
    %v354 = vld [vmem:[#allocation2 + $0x138] sm:$0xff]
    %v355 = vld [vmem:[#allocation2 + $0x140] sm:$0xff]
    %v356 = vld [vmem:[#allocation2 + $0x148] sm:$0xff]
    %v357 = vld [vmem:[#allocation2 + $0x150] sm:$0xff]
    %v358 = vld [vmem:[#allocation2 + $0x158] sm:$0xff]
    %v359 = vld [vmem:[#allocation2 + $0x160] sm:$0xff]
    %v360 = vld [vmem:[#allocation2 + $0x168] sm:$0xff]
    %v361 = vld [vmem:[#allocation2 + $0x170] sm:$0xff]
    %v362 = vld [vmem:[#allocation2 + $0x178] sm:$0xff]
    %v363 = vld [vmem:[#allocation2 + $0x180] sm:$0xff]
    %v364 = vld [vmem:[#allocation2 + $0x188] sm:$0xff]
    %v365 = vld [vmem:[#allocation2 + $0x190] sm:$0xff]
    %v366 = vld [vmem:[#allocation2 + $0x198] sm:$0xff]
    %v367 = vld [vmem:[#allocation2 + $0x1a0] sm:$0xff]
    %v368 = vld [vmem:[#allocation2 + $0x1a8] sm:$0xff]
    %v369 = vld [vmem:[#allocation2 + $0x1b0] sm:$0xff]
    %v370 = vld [vmem:[#allocation2 + $0x1b8] sm:$0xff]
    %v371 = vld [vmem:[#allocation2 + $0x1c0] sm:$0xff]
    %v372 = vld [vmem:[#allocation2 + $0x1c8] sm:$0xff]
    %v373 = vld [vmem:[#allocation2 + $0x1d0] sm:$0xff]
    %v374 = vld [vmem:[#allocation2 + $0x1d8] sm:$0xff]
    %v375 = vld [vmem:[#allocation2 + $0x1e0] sm:$0xff]
    %v376 = vld [vmem:[#allocation2 + $0x1e8] sm:$0xff]
    %v377 = vld [vmem:[#allocation2 + $0x1f0] sm:$0xff]
    %v378 = vld [vmem:[#allocation2 + $0x1f8] sm:$0xff]
    %v379 = vld [vmem:[#allocation11] ss:$4 sm:$0xf]
    %v381 = vlaneseq
    %v382 = vshrl.u32 %v381, 7
    %v383 = vsub.s32 0, %v382
    %v384 = vrot.slane %v379, %v383
    %v385 = vlaneseq
    %v386 = vshrl.u32 %v385, 7
    %v387 = vsub.s32 1, %v386
    %v388 = vrot.slane %v379, %v387
    %v389 = vlaneseq
    %v390 = vshrl.u32 %v389, 7
    %v391 = vsub.s32 2, %v390
    %v392 = vrot.slane %v379, %v391
    %v393 = vlaneseq
    %v394 = vshrl.u32 %v393, 7
    %v395 = vsub.s32 3, %v394
    %v396 = vrot.slane %v379, %v395
    %v465 = vunpack.c.l.b16 %v315
    %v466 = vunpack.c.h.b16 %v315
    %v467 = vunpack.c.l.b16 %v316
    %v468 = vunpack.c.h.b16 %v316
    %v469 = vunpack.c.l.b16 %v317
    %v470 = vunpack.c.h.b16 %v317
    %v471 = vunpack.c.l.b16 %v318
    %v472 = vunpack.c.h.b16 %v318
    %v473 = vunpack.c.l.b16 %v319
    %v474 = vunpack.c.h.b16 %v319
    %v475 = vunpack.c.l.b16 %v320
    %v476 = vunpack.c.h.b16 %v320
    %v477 = vunpack.c.l.b16 %v321
    %v478 = vunpack.c.h.b16 %v321
    %v479 = vunpack.c.l.b16 %v322
    %v480 = vunpack.c.h.b16 %v322
    %v481 = vunpack.c.l.b16 %v323
    %v482 = vunpack.c.h.b16 %v323
    %v483 = vunpack.c.l.b16 %v324
    %v484 = vunpack.c.h.b16 %v324
    %v485 = vunpack.c.l.b16 %v325
    %v486 = vunpack.c.h.b16 %v325
    %v487 = vunpack.c.l.b16 %v326
    %v488 = vunpack.c.h.b16 %v326
    %v489 = vunpack.c.l.b16 %v327
    %v490 = vunpack.c.h.b16 %v327
    %v491 = vunpack.c.l.b16 %v328
    %v492 = vunpack.c.h.b16 %v328
    %v493 = vunpack.c.l.b16 %v329
    %v494 = vunpack.c.h.b16 %v329
    %v495 = vunpack.c.l.b16 %v330
    %v496 = vunpack.c.h.b16 %v330
    %v497 = vunpack.c.l.b16 %v331
    %v498 = vunpack.c.h.b16 %v331
    %v499 = vunpack.c.l.b16 %v332
    %v500 = vunpack.c.h.b16 %v332
    %v501 = vunpack.c.l.b16 %v333
    %v502 = vunpack.c.h.b16 %v333
    %v503 = vunpack.c.l.b16 %v334
    %v504 = vunpack.c.h.b16 %v334
    %v505 = vunpack.c.l.b16 %v335
    %v506 = vunpack.c.h.b16 %v335
    %v507 = vunpack.c.l.b16 %v336
    %v508 = vunpack.c.h.b16 %v336
    %v509 = vunpack.c.l.b16 %v337
    %v510 = vunpack.c.h.b16 %v337
    %v511 = vunpack.c.l.b16 %v338
    %v512 = vunpack.c.h.b16 %v338
    %v513 = vunpack.c.l.b16 %v339
    %v514 = vunpack.c.h.b16 %v339
    %v515 = vunpack.c.l.b16 %v340
    %v516 = vunpack.c.h.b16 %v340
    %v517 = vunpack.c.l.b16 %v341
    %v518 = vunpack.c.h.b16 %v341
    %v519 = vunpack.c.l.b16 %v342
    %v520 = vunpack.c.h.b16 %v342
    %v521 = vunpack.c.l.b16 %v343
    %v522 = vunpack.c.h.b16 %v343
    %v523 = vunpack.c.l.b16 %v344
    %v524 = vunpack.c.h.b16 %v344
    %v525 = vunpack.c.l.b16 %v345
    %v526 = vunpack.c.h.b16 %v345
    %v527 = vunpack.c.l.b16 %v346
    %v528 = vunpack.c.h.b16 %v346
    %v529 = vunpack.c.l.b16 %v347
    %v530 = vunpack.c.h.b16 %v347
    %v531 = vunpack.c.l.b16 %v348
    %v532 = vunpack.c.h.b16 %v348
    %v533 = vunpack.c.l.b16 %v349
    %v534 = vunpack.c.h.b16 %v349
    %v535 = vunpack.c.l.b16 %v350
    %v536 = vunpack.c.h.b16 %v350
    %v537 = vunpack.c.l.b16 %v351
    %v538 = vunpack.c.h.b16 %v351
    %v539 = vunpack.c.l.b16 %v352
    %v540 = vunpack.c.h.b16 %v352
    %v541 = vunpack.c.l.b16 %v353
    %v542 = vunpack.c.h.b16 %v353
    %v543 = vunpack.c.l.b16 %v354
    %v544 = vunpack.c.h.b16 %v354
    %v545 = vunpack.c.l.b16 %v355
    %v546 = vunpack.c.h.b16 %v355
    %v547 = vunpack.c.l.b16 %v356
    %v548 = vunpack.c.h.b16 %v356
    %v549 = vunpack.c.l.b16 %v357
    %v550 = vunpack.c.h.b16 %v357
    %v551 = vunpack.c.l.b16 %v358
    %v552 = vunpack.c.h.b16 %v358
    %v553 = vunpack.c.l.b16 %v359
    %v554 = vunpack.c.h.b16 %v359
    %v555 = vunpack.c.l.b16 %v360
    %v556 = vunpack.c.h.b16 %v360
    %v557 = vunpack.c.l.b16 %v361
    %v558 = vunpack.c.h.b16 %v361
    %v559 = vunpack.c.l.b16 %v362
    %v560 = vunpack.c.h.b16 %v362
    %v561 = vunpack.c.l.b16 %v363
    %v562 = vunpack.c.h.b16 %v363
    %v563 = vunpack.c.l.b16 %v364
    %v564 = vunpack.c.h.b16 %v364
    %v565 = vunpack.c.l.b16 %v365
    %v566 = vunpack.c.h.b16 %v365
    %v567 = vunpack.c.l.b16 %v366
    %v568 = vunpack.c.h.b16 %v366
    %v569 = vunpack.c.l.b16 %v367
    %v570 = vunpack.c.h.b16 %v367
    %v571 = vunpack.c.l.b16 %v368
    %v572 = vunpack.c.h.b16 %v368
    %v573 = vunpack.c.l.b16 %v369
    %v574 = vunpack.c.h.b16 %v369
    %v575 = vunpack.c.l.b16 %v370
    %v576 = vunpack.c.h.b16 %v370
    %v577 = vunpack.c.l.b16 %v371
    %v578 = vunpack.c.h.b16 %v371
    %v579 = vunpack.c.l.b16 %v372
    %v580 = vunpack.c.h.b16 %v372
    %v581 = vunpack.c.l.b16 %v373
    %v582 = vunpack.c.h.b16 %v373
    %v583 = vunpack.c.l.b16 %v374
    %v584 = vunpack.c.h.b16 %v374
    %v585 = vunpack.c.l.b16 %v375
    %v586 = vunpack.c.h.b16 %v375
    %v587 = vunpack.c.l.b16 %v376
    %v588 = vunpack.c.h.b16 %v376
    %v589 = vunpack.c.l.b16 %v377
    %v590 = vunpack.c.h.b16 %v377
    %v591 = vunpack.c.l.b16 %v378
    %v592 = vunpack.c.h.b16 %v378
    %v593 = vpack.c.b16 %v469, %v465
    %v594 = vpack.c.b16 %v470, %v466
    %v595 = vpack.c.b16 %v471, %v467
    %v596 = vpack.c.b16 %v472, %v468
    %v597 = vpack.c.b16 %v477, %v473
    %v598 = vpack.c.b16 %v478, %v474
    %v599 = vpack.c.b16 %v479, %v475
    %v600 = vpack.c.b16 %v480, %v476
    %v601 = vpack.c.b16 %v485, %v481
    %v602 = vpack.c.b16 %v486, %v482
    %v603 = vpack.c.b16 %v487, %v483
    %v604 = vpack.c.b16 %v488, %v484
    %v605 = vpack.c.b16 %v493, %v489
    %v606 = vpack.c.b16 %v494, %v490
    %v607 = vpack.c.b16 %v495, %v491
    %v608 = vpack.c.b16 %v496, %v492
    %v609 = vpack.c.b16 %v501, %v497
    %v610 = vpack.c.b16 %v502, %v498
    %v611 = vpack.c.b16 %v503, %v499
    %v612 = vpack.c.b16 %v504, %v500
    %v613 = vpack.c.b16 %v509, %v505
    %v614 = vpack.c.b16 %v510, %v506
    %v615 = vpack.c.b16 %v511, %v507
    %v616 = vpack.c.b16 %v512, %v508
    %v617 = vpack.c.b16 %v517, %v513
    %v618 = vpack.c.b16 %v518, %v514
    %v619 = vpack.c.b16 %v519, %v515
    %v620 = vpack.c.b16 %v520, %v516
    %v621 = vpack.c.b16 %v525, %v521
    %v622 = vpack.c.b16 %v526, %v522
    %v623 = vpack.c.b16 %v527, %v523
    %v624 = vpack.c.b16 %v528, %v524
    %v625 = vpack.c.b16 %v533, %v529
    %v626 = vpack.c.b16 %v534, %v530
    %v627 = vpack.c.b16 %v535, %v531
    %v628 = vpack.c.b16 %v536, %v532
    %v629 = vpack.c.b16 %v541, %v537
    %v630 = vpack.c.b16 %v542, %v538
    %v631 = vpack.c.b16 %v543, %v539
    %v632 = vpack.c.b16 %v544, %v540
    %v633 = vpack.c.b16 %v549, %v545
    %v634 = vpack.c.b16 %v550, %v546
    %v635 = vpack.c.b16 %v551, %v547
    %v636 = vpack.c.b16 %v552, %v548
    %v637 = vpack.c.b16 %v557, %v553
    %v638 = vpack.c.b16 %v558, %v554
    %v639 = vpack.c.b16 %v559, %v555
    %v640 = vpack.c.b16 %v560, %v556
    %v641 = vpack.c.b16 %v565, %v561
    %v642 = vpack.c.b16 %v566, %v562
    %v643 = vpack.c.b16 %v567, %v563
    %v644 = vpack.c.b16 %v568, %v564
    %v645 = vpack.c.b16 %v573, %v569
    %v646 = vpack.c.b16 %v574, %v570
    %v647 = vpack.c.b16 %v575, %v571
    %v648 = vpack.c.b16 %v576, %v572
    %v649 = vpack.c.b16 %v581, %v577
    %v650 = vpack.c.b16 %v582, %v578
    %v651 = vpack.c.b16 %v583, %v579
    %v652 = vpack.c.b16 %v584, %v580
    %v653 = vpack.c.b16 %v589, %v585
    %v654 = vpack.c.b16 %v590, %v586
    %v655 = vpack.c.b16 %v591, %v587
    %v656 = vpack.c.b16 %v592, %v588
    %721 = vmatprep.subr.bf16.mxu0 %v622
    %722 = vmatpush1.bf16.msra.mxu0 %v621
    %723 = vmatprep.subr.bf16.mxu0 %v618
    %724 = vmatpush1.bf16.msra.mxu0 %v617
    %725 = vmatprep.subr.bf16.mxu0 %v614
    %726 = vmatpush1.bf16.msra.mxu0 %v613
    %727 = vmatprep.subr.bf16.mxu0 %v610
    %728 = vmatpush1.bf16.msra.mxu0 %v609
    %729 = vmatprep.subr.bf16.mxu0 %v606
    %730 = vmatpush1.bf16.msra.mxu0 %v605
    %731 = vmatprep.subr.bf16.mxu0 %v602
    %732 = vmatpush1.bf16.msra.mxu0 %v601
    %733 = vmatprep.subr.bf16.mxu0 %v598
    %734 = vmatpush1.bf16.msra.mxu0 %v597
    %735 = vmatprep.subr.bf16.mxu0 %v594
    %736 = vmatpush1.bf16.msra.mxu0 %v593
    %737 = vmatprep.subr.bf16.mxu0 %v654
    %738 = vmatpush2.bf16.msra.mxu0 %v653
    %739 = vmatprep.subr.bf16.mxu0 %v650
    %740 = vmatpush2.bf16.msra.mxu0 %v649
    %741 = vmatprep.subr.bf16.mxu0 %v646
    %742 = vmatpush2.bf16.msra.mxu0 %v645
    %743 = vmatprep.subr.bf16.mxu0 %v642
    %744 = vmatpush2.bf16.msra.mxu0 %v641
    %745 = vmatprep.subr.bf16.mxu0 %v638
    %746 = vmatpush2.bf16.msra.mxu0 %v637
    %747 = vmatprep.subr.bf16.mxu0 %v634
    %748 = vmatpush2.bf16.msra.mxu0 %v633
    %749 = vmatprep.subr.bf16.mxu0 %v630
    %750 = vmatpush2.bf16.msra.mxu0 %v629
    %751 = vmatprep.subr.bf16.mxu0 %v626
    %752 = vmatpush2.bf16.msra.mxu0 %v625
    %753 = vmatprep.mubr.bf16.mxu0 %v314
    %754 = vmatmul.mubr.bf16.gmra.mxu0 %v313
    %v755 = vpop.f32.mrf.mxu0
    %v756 = vadd.f32 %v384, %v755
    %v757 = vpop.f32.mrf.mxu0
    %v758 = vadd.f32 %v388, %v757
    %v759 = vpop.f32.mrf.mxu0
    %v760 = vpop.f32.mrf.mxu0
    %761 = vdwg.mxu0
    %762 = vmatprep.subr.bf16.mxu0 %v624
    %763 = vmatpush1.bf16.msra.mxu0 %v623
    %764 = vmatprep.subr.bf16.mxu0 %v620
    %765 = vmatpush1.bf16.msra.mxu0 %v619
    %766 = vmatprep.subr.bf16.mxu0 %v616
    %767 = vmatpush1.bf16.msra.mxu0 %v615
    %768 = vmatprep.subr.bf16.mxu0 %v612
    %769 = vmatpush1.bf16.msra.mxu0 %v611
    %770 = vmatprep.subr.bf16.mxu0 %v608
    %771 = vmatpush1.bf16.msra.mxu0 %v607
    %772 = vmatprep.subr.bf16.mxu0 %v604
    %773 = vmatpush1.bf16.msra.mxu0 %v603
    %774 = vmatprep.subr.bf16.mxu0 %v600
    %775 = vmatpush1.bf16.msra.mxu0 %v599
    %776 = vmatprep.subr.bf16.mxu0 %v596
    %777 = vmatpush1.bf16.msra.mxu0 %v595
    %778 = vmatprep.subr.bf16.mxu0 %v656
    %779 = vmatpush2.bf16.msra.mxu0 %v655
    %780 = vmatprep.subr.bf16.mxu0 %v652
    %781 = vmatpush2.bf16.msra.mxu0 %v651
    %782 = vmatprep.subr.bf16.mxu0 %v648
    %783 = vmatpush2.bf16.msra.mxu0 %v647
    %784 = vmatprep.subr.bf16.mxu0 %v644
    %785 = vmatpush2.bf16.msra.mxu0 %v643
    %786 = vmatprep.subr.bf16.mxu0 %v640
    %787 = vmatpush2.bf16.msra.mxu0 %v639
    %788 = vmatprep.subr.bf16.mxu0 %v636
    %789 = vmatpush2.bf16.msra.mxu0 %v635
    %790 = vmatprep.subr.bf16.mxu0 %v632
    %791 = vmatpush2.bf16.msra.mxu0 %v631
    %792 = vmatprep.subr.bf16.mxu0 %v628
    %793 = vmatpush2.bf16.msra.mxu0 %v627
    %794 = vmatprep.mubr.bf16.mxu0 %v314
    %795 = vmatmul.mubr.bf16.gmra.mxu0 %v313
    %v796 = vpop.f32.mrf.mxu0
    %v797 = vadd.f32 %v392, %v796
    %v798 = vpop.f32.mrf.mxu0
    %v799 = vadd.f32 %v396, %v798
    %v800 = vpop.f32.mrf.mxu0
    %v801 = vpop.f32.mrf.mxu0
    %802 = vdwg.mxu0
    %v803 = vmax.f32 %v756, 0.0
    %v804 = vmax.f32 %v758, 0.0
    %v805 = vmax.f32 %v797, 0.0
    %v806 = vmax.f32 %v799, 0.0
    %s807 = scalar_lea.vmem [#allocation11], 1
    %v808 = vld [vmem:[%s807] ss:$4 sm:$0xf]
    %s809 = scalar_lea.vmem [#allocation11], 2
    %v810 = vld [vmem:[%s809] ss:$4 sm:$0xf]
    %v811 = vrot.slane %v803, 4
    %v812 = vadd.f32 %v803, %v811
    %v813 = vrot.slane %v812, 2
    %v814 = vadd.f32 %v812, %v813
    %v815 = vrot.slane %v814, 1
    %v816 = vadd.f32 %v814, %v815
    %v817 = vrot.slane %v804, 4
    %v818 = vadd.f32 %v804, %v817
    %v819 = vrot.slane %v818, 2
    %v820 = vadd.f32 %v818, %v819
    %v821 = vrot.slane %v820, 1
    %v822 = vadd.f32 %v820, %v821
    %v823 = vrot.slane %v805, 4
    %v824 = vadd.f32 %v805, %v823
    %v825 = vrot.slane %v824, 2
    %v826 = vadd.f32 %v824, %v825
    %v827 = vrot.slane %v826, 1
    %v828 = vadd.f32 %v826, %v827
    %v829 = vrot.slane %v806, 4
    %v830 = vadd.f32 %v806, %v829
    %v831 = vrot.slane %v830, 2
    %v832 = vadd.f32 %v830, %v831
    %v833 = vrot.slane %v832, 1
    %v834 = vadd.f32 %v832, %v833
    %v835 = vmul.f32 %v816, %v239
    %v836 = vmul.f32 %v822, %v239
    %v837 = vmul.f32 %v828, %v239
    %v838 = vmul.f32 %v834, %v239
    %v839 = vsub.f32 %v803, %v835
    %v840 = vsub.f32 %v804, %v836
    %v841 = vsub.f32 %v805, %v837
    %v842 = vsub.f32 %v806, %v838
    %v843 = vmul.f32 %v839, %v839
    %v844 = vmul.f32 %v840, %v840
    %v845 = vmul.f32 %v841, %v841
    %v846 = vmul.f32 %v842, %v842
    %v847 = vrot.slane %v843, 4
    %v848 = vadd.f32 %v843, %v847
    %v849 = vrot.slane %v848, 2
    %v850 = vadd.f32 %v848, %v849
    %v851 = vrot.slane %v850, 1
    %v852 = vadd.f32 %v850, %v851
    %v853 = vrot.slane %v844, 4
    %v854 = vadd.f32 %v844, %v853
    %v855 = vrot.slane %v854, 2
    %v856 = vadd.f32 %v854, %v855
    %v857 = vrot.slane %v856, 1
    %v858 = vadd.f32 %v856, %v857
    %v859 = vrot.slane %v845, 4
    %v860 = vadd.f32 %v845, %v859
    %v861 = vrot.slane %v860, 2
    %v862 = vadd.f32 %v860, %v861
    %v863 = vrot.slane %v862, 1
    %v864 = vadd.f32 %v862, %v863
    %v865 = vrot.slane %v846, 4
    %v866 = vadd.f32 %v846, %v865
    %v867 = vrot.slane %v866, 2
    %v868 = vadd.f32 %v866, %v867
    %v869 = vrot.slane %v868, 1
    %v870 = vadd.f32 %v868, %v869
    %v871 = vmul.f32 %v852, %v239
    %v872 = vmul.f32 %v858, %v239
    %v873 = vmul.f32 %v864, %v239
    %v874 = vmul.f32 %v870, %v239
    %v875 = vadd.f32 %v871, 1e-05
    %v876 = vadd.f32 %v872, 1e-05
    %v877 = vadd.f32 %v873, 1e-05
    %v878 = vadd.f32 %v874, 1e-05
    %v879 = vrsqrt.pop %v875
    %v880 = vrsqrt.pop %v876
    %v881 = vrsqrt.pop %v877
    %v882 = vrsqrt.pop %v878
    %v887 = vcombine.low %v879, %v880
    %v888 = vcombine.low %v881, %v882
    %v890 = vunpack.c.l.s4 1966171168
    %v891 = vunpack.c.0.s8 %v890
    %v892 = vlaneseq
    %v893 = vshrl.u32 %v892, 7
    %v894 = vsub.s32 %v891, %v893
    %v895 = vrot.slane %v887, %v894
    %v897 = vunpack.c.l.s4 1966171168
    %v898 = vunpack.c.0.s8 %v897
    %v899 = vlaneseq
    %v900 = vshrl.u32 %v899, 7
    %v901 = vsub.s32 %v898, %v900
    %v902 = vrot.slane %v888, %v901
    %v903 = vcombine.low %v895, %v902
    %v905 = vunpack.c.l.s4 1966171168
    %v906 = vunpack.c.0.s8 %v905
    %v907 = vlaneseq
    %v908 = vshrl.u32 %v907, 7
    %v909 = vsub.s32 %v906, %v908
    %v910 = vrot.slane %v903, %v909
    %v912 = vmul.f32 %v808, %v910
    %v914 = vlaneseq
    %v915 = vshrl.u32 %v914, 7
    %v916 = vsub.s32 0, %v915
    %v917 = vrot.slane %v912, %v916
    %v918 = vlaneseq
    %v919 = vshrl.u32 %v918, 7
    %v920 = vsub.s32 1, %v919
    %v921 = vrot.slane %v912, %v920
    %v922 = vlaneseq
    %v923 = vshrl.u32 %v922, 7
    %v924 = vsub.s32 2, %v923
    %v925 = vrot.slane %v912, %v924
    %v926 = vlaneseq
    %v927 = vshrl.u32 %v926, 7
    %v928 = vsub.s32 3, %v927
    %v929 = vrot.slane %v912, %v928
    %v934 = vmul.f32 %v839, %v917
    %v935 = vmul.f32 %v840, %v921
    %v936 = vmul.f32 %v841, %v925
    %v937 = vmul.f32 %v842, %v929
    %v939 = vlaneseq
    %v940 = vshrl.u32 %v939, 7
    %v941 = vsub.s32 0, %v940
    %v942 = vrot.slane %v810, %v941
    %v943 = vlaneseq
    %v944 = vshrl.u32 %v943, 7
    %v945 = vsub.s32 1, %v944
    %v946 = vrot.slane %v810, %v945
    %v947 = vlaneseq
    %v948 = vshrl.u32 %v947, 7
    %v949 = vsub.s32 2, %v948
    %v950 = vrot.slane %v810, %v949
    %v951 = vlaneseq
    %v952 = vshrl.u32 %v951, 7
    %v953 = vsub.s32 3, %v952
    %v954 = vrot.slane %v810, %v953
    %v959 = vadd.f32 %v934, %v942
    %v960 = vadd.f32 %v935, %v946
    %v961 = vadd.f32 %v936, %v950
    %v962 = vadd.f32 %v937, %v954
    %s963 = smul.u32 4, 64
    %s964 = smul.u32 %s963, 2
    %s965 = sshll.u32 %s964, 4
    %966 = dma.done %s113, %s965
    %v967 = vpack.c.bf16 %v959, %v959
    %v968 = vpack.c.bf16 %v960, %v960
    %v969 = vpack.c.bf16 %v961, %v961
    %v970 = vpack.c.bf16 %v962, %v962
    %v971 = vld [vmem:[#allocation3] sm:$0xff]
    %v972 = vld [vmem:[#allocation3 + $0x8] sm:$0xff]
    %v973 = vld [vmem:[#allocation3 + $0x10] sm:$0xff]
    %v974 = vld [vmem:[#allocation3 + $0x18] sm:$0xff]
    %v975 = vld [vmem:[#allocation3 + $0x20] sm:$0xff]
    %v976 = vld [vmem:[#allocation3 + $0x28] sm:$0xff]
    %v977 = vld [vmem:[#allocation3 + $0x30] sm:$0xff]
    %v978 = vld [vmem:[#allocation3 + $0x38] sm:$0xff]
    %v979 = vld [vmem:[#allocation3 + $0x40] sm:$0xff]
    %v980 = vld [vmem:[#allocation3 + $0x48] sm:$0xff]
    %v981 = vld [vmem:[#allocation3 + $0x50] sm:$0xff]
    %v982 = vld [vmem:[#allocation3 + $0x58] sm:$0xff]
    %v983 = vld [vmem:[#allocation3 + $0x60] sm:$0xff]
    %v984 = vld [vmem:[#allocation3 + $0x68] sm:$0xff]
    %v985 = vld [vmem:[#allocation3 + $0x70] sm:$0xff]
    %v986 = vld [vmem:[#allocation3 + $0x78] sm:$0xff]
    %v987 = vld [vmem:[#allocation3 + $0x80] sm:$0xff]
    %v988 = vld [vmem:[#allocation3 + $0x88] sm:$0xff]
    %v989 = vld [vmem:[#allocation3 + $0x90] sm:$0xff]
    %v990 = vld [vmem:[#allocation3 + $0x98] sm:$0xff]
    %v991 = vld [vmem:[#allocation3 + $0xa0] sm:$0xff]
    %v992 = vld [vmem:[#allocation3 + $0xa8] sm:$0xff]
    %v993 = vld [vmem:[#allocation3 + $0xb0] sm:$0xff]
    %v994 = vld [vmem:[#allocation3 + $0xb8] sm:$0xff]
    %v995 = vld [vmem:[#allocation3 + $0xc0] sm:$0xff]
    %v996 = vld [vmem:[#allocation3 + $0xc8] sm:$0xff]
    %v997 = vld [vmem:[#allocation3 + $0xd0] sm:$0xff]
    %v998 = vld [vmem:[#allocation3 + $0xd8] sm:$0xff]
    %v999 = vld [vmem:[#allocation3 + $0xe0] sm:$0xff]
    %v1000 = vld [vmem:[#allocation3 + $0xe8] sm:$0xff]
    %v1001 = vld [vmem:[#allocation3 + $0xf0] sm:$0xff]
    %v1002 = vld [vmem:[#allocation3 + $0xf8] sm:$0xff]
    %v1003 = vld [vmem:[#allocation3 + $0x100] sm:$0xff]
    %v1004 = vld [vmem:[#allocation3 + $0x108] sm:$0xff]
    %v1005 = vld [vmem:[#allocation3 + $0x110] sm:$0xff]
    %v1006 = vld [vmem:[#allocation3 + $0x118] sm:$0xff]
    %v1007 = vld [vmem:[#allocation3 + $0x120] sm:$0xff]
    %v1008 = vld [vmem:[#allocation3 + $0x128] sm:$0xff]
    %v1009 = vld [vmem:[#allocation3 + $0x130] sm:$0xff]
    %v1010 = vld [vmem:[#allocation3 + $0x138] sm:$0xff]
    %v1011 = vld [vmem:[#allocation3 + $0x140] sm:$0xff]
    %v1012 = vld [vmem:[#allocation3 + $0x148] sm:$0xff]
    %v1013 = vld [vmem:[#allocation3 + $0x150] sm:$0xff]
    %v1014 = vld [vmem:[#allocation3 + $0x158] sm:$0xff]
    %v1015 = vld [vmem:[#allocation3 + $0x160] sm:$0xff]
    %v1016 = vld [vmem:[#allocation3 + $0x168] sm:$0xff]
    %v1017 = vld [vmem:[#allocation3 + $0x170] sm:$0xff]
    %v1018 = vld [vmem:[#allocation3 + $0x178] sm:$0xff]
    %v1019 = vld [vmem:[#allocation3 + $0x180] sm:$0xff]
    %v1020 = vld [vmem:[#allocation3 + $0x188] sm:$0xff]
    %v1021 = vld [vmem:[#allocation3 + $0x190] sm:$0xff]
    %v1022 = vld [vmem:[#allocation3 + $0x198] sm:$0xff]
    %v1023 = vld [vmem:[#allocation3 + $0x1a0] sm:$0xff]
    %v1024 = vld [vmem:[#allocation3 + $0x1a8] sm:$0xff]
    %v1025 = vld [vmem:[#allocation3 + $0x1b0] sm:$0xff]
    %v1026 = vld [vmem:[#allocation3 + $0x1b8] sm:$0xff]
    %v1027 = vld [vmem:[#allocation3 + $0x1c0] sm:$0xff]
    %v1028 = vld [vmem:[#allocation3 + $0x1c8] sm:$0xff]
    %v1029 = vld [vmem:[#allocation3 + $0x1d0] sm:$0xff]
    %v1030 = vld [vmem:[#allocation3 + $0x1d8] sm:$0xff]
    %v1031 = vld [vmem:[#allocation3 + $0x1e0] sm:$0xff]
    %v1032 = vld [vmem:[#allocation3 + $0x1e8] sm:$0xff]
    %v1033 = vld [vmem:[#allocation3 + $0x1f0] sm:$0xff]
    %v1034 = vld [vmem:[#allocation3 + $0x1f8] sm:$0xff]
    %v1035 = vld [vmem:[#allocation13] ss:$4 sm:$0x3]
    %v1037 = vlaneseq
    %v1038 = vshrl.u32 %v1037, 7
    %v1039 = vsub.s32 0, %v1038
    %v1040 = vrot.slane %v1035, %v1039
    %v1041 = vlaneseq
    %v1042 = vshrl.u32 %v1041, 7
    %v1043 = vsub.s32 1, %v1042
    %v1044 = vrot.slane %v1035, %v1043
    %v1111 = vunpack.c.l.b16 %v971
    %v1112 = vunpack.c.h.b16 %v971
    %v1113 = vunpack.c.l.b16 %v972
    %v1114 = vunpack.c.h.b16 %v972
    %v1115 = vunpack.c.l.b16 %v973
    %v1116 = vunpack.c.h.b16 %v973
    %v1117 = vunpack.c.l.b16 %v974
    %v1118 = vunpack.c.h.b16 %v974
    %v1119 = vunpack.c.l.b16 %v975
    %v1120 = vunpack.c.h.b16 %v975
    %v1121 = vunpack.c.l.b16 %v976
    %v1122 = vunpack.c.h.b16 %v976
    %v1123 = vunpack.c.l.b16 %v977
    %v1124 = vunpack.c.h.b16 %v977
    %v1125 = vunpack.c.l.b16 %v978
    %v1126 = vunpack.c.h.b16 %v978
    %v1127 = vunpack.c.l.b16 %v979
    %v1128 = vunpack.c.h.b16 %v979
    %v1129 = vunpack.c.l.b16 %v980
    %v1130 = vunpack.c.h.b16 %v980
    %v1131 = vunpack.c.l.b16 %v981
    %v1132 = vunpack.c.h.b16 %v981
    %v1133 = vunpack.c.l.b16 %v982
    %v1134 = vunpack.c.h.b16 %v982
    %v1135 = vunpack.c.l.b16 %v983
    %v1136 = vunpack.c.h.b16 %v983
    %v1137 = vunpack.c.l.b16 %v984
    %v1138 = vunpack.c.h.b16 %v984
    %v1139 = vunpack.c.l.b16 %v985
    %v1140 = vunpack.c.h.b16 %v985
    %v1141 = vunpack.c.l.b16 %v986
    %v1142 = vunpack.c.h.b16 %v986
    %v1143 = vunpack.c.l.b16 %v987
    %v1144 = vunpack.c.h.b16 %v987
    %v1145 = vunpack.c.l.b16 %v988
    %v1146 = vunpack.c.h.b16 %v988
    %v1147 = vunpack.c.l.b16 %v989
    %v1148 = vunpack.c.h.b16 %v989
    %v1149 = vunpack.c.l.b16 %v990
    %v1150 = vunpack.c.h.b16 %v990
    %v1151 = vunpack.c.l.b16 %v991
    %v1152 = vunpack.c.h.b16 %v991
    %v1153 = vunpack.c.l.b16 %v992
    %v1154 = vunpack.c.h.b16 %v992
    %v1155 = vunpack.c.l.b16 %v993
    %v1156 = vunpack.c.h.b16 %v993
    %v1157 = vunpack.c.l.b16 %v994
    %v1158 = vunpack.c.h.b16 %v994
    %v1159 = vunpack.c.l.b16 %v995
    %v1160 = vunpack.c.h.b16 %v995
    %v1161 = vunpack.c.l.b16 %v996
    %v1162 = vunpack.c.h.b16 %v996
    %v1163 = vunpack.c.l.b16 %v997
    %v1164 = vunpack.c.h.b16 %v997
    %v1165 = vunpack.c.l.b16 %v998
    %v1166 = vunpack.c.h.b16 %v998
    %v1167 = vunpack.c.l.b16 %v999
    %v1168 = vunpack.c.h.b16 %v999
    %v1169 = vunpack.c.l.b16 %v1000
    %v1170 = vunpack.c.h.b16 %v1000
    %v1171 = vunpack.c.l.b16 %v1001
    %v1172 = vunpack.c.h.b16 %v1001
    %v1173 = vunpack.c.l.b16 %v1002
    %v1174 = vunpack.c.h.b16 %v1002
    %v1175 = vunpack.c.l.b16 %v1003
    %v1176 = vunpack.c.h.b16 %v1003
    %v1177 = vunpack.c.l.b16 %v1004
    %v1178 = vunpack.c.h.b16 %v1004
    %v1179 = vunpack.c.l.b16 %v1005
    %v1180 = vunpack.c.h.b16 %v1005
    %v1181 = vunpack.c.l.b16 %v1006
    %v1182 = vunpack.c.h.b16 %v1006
    %v1183 = vunpack.c.l.b16 %v1007
    %v1184 = vunpack.c.h.b16 %v1007
    %v1185 = vunpack.c.l.b16 %v1008
    %v1186 = vunpack.c.h.b16 %v1008
    %v1187 = vunpack.c.l.b16 %v1009
    %v1188 = vunpack.c.h.b16 %v1009
    %v1189 = vunpack.c.l.b16 %v1010
    %v1190 = vunpack.c.h.b16 %v1010
    %v1191 = vunpack.c.l.b16 %v1011
    %v1192 = vunpack.c.h.b16 %v1011
    %v1193 = vunpack.c.l.b16 %v1012
    %v1194 = vunpack.c.h.b16 %v1012
    %v1195 = vunpack.c.l.b16 %v1013
    %v1196 = vunpack.c.h.b16 %v1013
    %v1197 = vunpack.c.l.b16 %v1014
    %v1198 = vunpack.c.h.b16 %v1014
    %v1199 = vunpack.c.l.b16 %v1015
    %v1200 = vunpack.c.h.b16 %v1015
    %v1201 = vunpack.c.l.b16 %v1016
    %v1202 = vunpack.c.h.b16 %v1016
    %v1203 = vunpack.c.l.b16 %v1017
    %v1204 = vunpack.c.h.b16 %v1017
    %v1205 = vunpack.c.l.b16 %v1018
    %v1206 = vunpack.c.h.b16 %v1018
    %v1207 = vunpack.c.l.b16 %v1019
    %v1208 = vunpack.c.h.b16 %v1019
    %v1209 = vunpack.c.l.b16 %v1020
    %v1210 = vunpack.c.h.b16 %v1020
    %v1211 = vunpack.c.l.b16 %v1021
    %v1212 = vunpack.c.h.b16 %v1021
    %v1213 = vunpack.c.l.b16 %v1022
    %v1214 = vunpack.c.h.b16 %v1022
    %v1215 = vunpack.c.l.b16 %v1023
    %v1216 = vunpack.c.h.b16 %v1023
    %v1217 = vunpack.c.l.b16 %v1024
    %v1218 = vunpack.c.h.b16 %v1024
    %v1219 = vunpack.c.l.b16 %v1025
    %v1220 = vunpack.c.h.b16 %v1025
    %v1221 = vunpack.c.l.b16 %v1026
    %v1222 = vunpack.c.h.b16 %v1026
    %v1223 = vunpack.c.l.b16 %v1027
    %v1224 = vunpack.c.h.b16 %v1027
    %v1225 = vunpack.c.l.b16 %v1028
    %v1226 = vunpack.c.h.b16 %v1028
    %v1227 = vunpack.c.l.b16 %v1029
    %v1228 = vunpack.c.h.b16 %v1029
    %v1229 = vunpack.c.l.b16 %v1030
    %v1230 = vunpack.c.h.b16 %v1030
    %v1231 = vunpack.c.l.b16 %v1031
    %v1232 = vunpack.c.h.b16 %v1031
    %v1233 = vunpack.c.l.b16 %v1032
    %v1234 = vunpack.c.h.b16 %v1032
    %v1235 = vunpack.c.l.b16 %v1033
    %v1236 = vunpack.c.h.b16 %v1033
    %v1237 = vunpack.c.l.b16 %v1034
    %v1238 = vunpack.c.h.b16 %v1034
    %v1239 = vpack.c.b16 %v1113, %v1111
    %v1240 = vpack.c.b16 %v1114, %v1112
    %v1241 = vpack.c.b16 %v1117, %v1115
    %v1242 = vpack.c.b16 %v1118, %v1116
    %v1243 = vpack.c.b16 %v1121, %v1119
    %v1244 = vpack.c.b16 %v1122, %v1120
    %v1245 = vpack.c.b16 %v1125, %v1123
    %v1246 = vpack.c.b16 %v1126, %v1124
    %v1247 = vpack.c.b16 %v1129, %v1127
    %v1248 = vpack.c.b16 %v1130, %v1128
    %v1249 = vpack.c.b16 %v1133, %v1131
    %v1250 = vpack.c.b16 %v1134, %v1132
    %v1251 = vpack.c.b16 %v1137, %v1135
    %v1252 = vpack.c.b16 %v1138, %v1136
    %v1253 = vpack.c.b16 %v1141, %v1139
    %v1254 = vpack.c.b16 %v1142, %v1140
    %v1255 = vpack.c.b16 %v1145, %v1143
    %v1256 = vpack.c.b16 %v1146, %v1144
    %v1257 = vpack.c.b16 %v1149, %v1147
    %v1258 = vpack.c.b16 %v1150, %v1148
    %v1259 = vpack.c.b16 %v1153, %v1151
    %v1260 = vpack.c.b16 %v1154, %v1152
    %v1261 = vpack.c.b16 %v1157, %v1155
    %v1262 = vpack.c.b16 %v1158, %v1156
    %v1263 = vpack.c.b16 %v1161, %v1159
    %v1264 = vpack.c.b16 %v1162, %v1160
    %v1265 = vpack.c.b16 %v1165, %v1163
    %v1266 = vpack.c.b16 %v1166, %v1164
    %v1267 = vpack.c.b16 %v1169, %v1167
    %v1268 = vpack.c.b16 %v1170, %v1168
    %v1269 = vpack.c.b16 %v1173, %v1171
    %v1270 = vpack.c.b16 %v1174, %v1172
    %v1271 = vpack.c.b16 %v1177, %v1175
    %v1272 = vpack.c.b16 %v1178, %v1176
    %v1273 = vpack.c.b16 %v1181, %v1179
    %v1274 = vpack.c.b16 %v1182, %v1180
    %v1275 = vpack.c.b16 %v1185, %v1183
    %v1276 = vpack.c.b16 %v1186, %v1184
    %v1277 = vpack.c.b16 %v1189, %v1187
    %v1278 = vpack.c.b16 %v1190, %v1188
    %v1279 = vpack.c.b16 %v1193, %v1191
    %v1280 = vpack.c.b16 %v1194, %v1192
    %v1281 = vpack.c.b16 %v1197, %v1195
    %v1282 = vpack.c.b16 %v1198, %v1196
    %v1283 = vpack.c.b16 %v1201, %v1199
    %v1284 = vpack.c.b16 %v1202, %v1200
    %v1285 = vpack.c.b16 %v1205, %v1203
    %v1286 = vpack.c.b16 %v1206, %v1204
    %v1287 = vpack.c.b16 %v1209, %v1207
    %v1288 = vpack.c.b16 %v1210, %v1208
    %v1289 = vpack.c.b16 %v1213, %v1211
    %v1290 = vpack.c.b16 %v1214, %v1212
    %v1291 = vpack.c.b16 %v1217, %v1215
    %v1292 = vpack.c.b16 %v1218, %v1216
    %v1293 = vpack.c.b16 %v1221, %v1219
    %v1294 = vpack.c.b16 %v1222, %v1220
    %v1295 = vpack.c.b16 %v1225, %v1223
    %v1296 = vpack.c.b16 %v1226, %v1224
    %v1297 = vpack.c.b16 %v1229, %v1227
    %v1298 = vpack.c.b16 %v1230, %v1228
    %v1299 = vpack.c.b16 %v1233, %v1231
    %v1300 = vpack.c.b16 %v1234, %v1232
    %v1301 = vpack.c.b16 %v1237, %v1235
    %v1302 = vpack.c.b16 %v1238, %v1236
    %1367 = vmatprep.subr.bf16.mxu0 %v1254
    %1368 = vmatpush1.bf16.msra.mxu0 %v1253
    %1369 = vmatprep.subr.bf16.mxu0 %v1252
    %1370 = vmatpush1.bf16.msra.mxu0 %v1251
    %1371 = vmatprep.subr.bf16.mxu0 %v1250
    %1372 = vmatpush1.bf16.msra.mxu0 %v1249
    %1373 = vmatprep.subr.bf16.mxu0 %v1248
    %1374 = vmatpush1.bf16.msra.mxu0 %v1247
    %1375 = vmatprep.subr.bf16.mxu0 %v1246
    %1376 = vmatpush1.bf16.msra.mxu0 %v1245
    %1377 = vmatprep.subr.bf16.mxu0 %v1244
    %1378 = vmatpush1.bf16.msra.mxu0 %v1243
    %1379 = vmatprep.subr.bf16.mxu0 %v1242
    %1380 = vmatpush1.bf16.msra.mxu0 %v1241
    %1381 = vmatprep.subr.bf16.mxu0 %v1240
    %1382 = vmatpush1.bf16.msra.mxu0 %v1239
    %1383 = vmatprep.subr.bf16.mxu0 %v1270
    %1384 = vmatpush2.bf16.msra.mxu0 %v1269
    %1385 = vmatprep.subr.bf16.mxu0 %v1268
    %1386 = vmatpush2.bf16.msra.mxu0 %v1267
    %1387 = vmatprep.subr.bf16.mxu0 %v1266
    %1388 = vmatpush2.bf16.msra.mxu0 %v1265
    %1389 = vmatprep.subr.bf16.mxu0 %v1264
    %1390 = vmatpush2.bf16.msra.mxu0 %v1263
    %1391 = vmatprep.subr.bf16.mxu0 %v1262
    %1392 = vmatpush2.bf16.msra.mxu0 %v1261
    %1393 = vmatprep.subr.bf16.mxu0 %v1260
    %1394 = vmatpush2.bf16.msra.mxu0 %v1259
    %1395 = vmatprep.subr.bf16.mxu0 %v1258
    %1396 = vmatpush2.bf16.msra.mxu0 %v1257
    %1397 = vmatprep.subr.bf16.mxu0 %v1256
    %1398 = vmatpush2.bf16.msra.mxu0 %v1255
    %1399 = vmatprep.mubr.bf16.mxu0 %v968
    %1400 = vmatmul.mubr.bf16.gmra.mxu0 %v967
    %v1401 = vpop.f32.mrf.mxu0
    %v1402 = vadd.f32 %v1040, %v1401
    %v1403 = vpop.f32.mrf.mxu0
    %v1404 = vadd.f32 %v1044, %v1403
    %v1405 = vpop.f32.mrf.mxu0
    %v1406 = vpop.f32.mrf.mxu0
    %1407 = vdwg.mxu0
    %1408 = vmatprep.subr.bf16.mxu0 %v1286
    %1409 = vmatpush1.bf16.msra.mxu0 %v1285
    %1410 = vmatprep.subr.bf16.mxu0 %v1284
    %1411 = vmatpush1.bf16.msra.mxu0 %v1283
    %1412 = vmatprep.subr.bf16.mxu0 %v1282
    %1413 = vmatpush1.bf16.msra.mxu0 %v1281
    %1414 = vmatprep.subr.bf16.mxu0 %v1280
    %1415 = vmatpush1.bf16.msra.mxu0 %v1279
    %1416 = vmatprep.subr.bf16.mxu0 %v1278
    %1417 = vmatpush1.bf16.msra.mxu0 %v1277
    %1418 = vmatprep.subr.bf16.mxu0 %v1276
    %1419 = vmatpush1.bf16.msra.mxu0 %v1275
    %1420 = vmatprep.subr.bf16.mxu0 %v1274
    %1421 = vmatpush1.bf16.msra.mxu0 %v1273
    %1422 = vmatprep.subr.bf16.mxu0 %v1272
    %1423 = vmatpush1.bf16.msra.mxu0 %v1271
    %1424 = vmatprep.subr.bf16.mxu0 %v1302
    %1425 = vmatpush2.bf16.msra.mxu0 %v1301
    %1426 = vmatprep.subr.bf16.mxu0 %v1300
    %1427 = vmatpush2.bf16.msra.mxu0 %v1299
    %1428 = vmatprep.subr.bf16.mxu0 %v1298
    %1429 = vmatpush2.bf16.msra.mxu0 %v1297
    %1430 = vmatprep.subr.bf16.mxu0 %v1296
    %1431 = vmatpush2.bf16.msra.mxu0 %v1295
    %1432 = vmatprep.subr.bf16.mxu0 %v1294
    %1433 = vmatpush2.bf16.msra.mxu0 %v1293
    %1434 = vmatprep.subr.bf16.mxu0 %v1292
    %1435 = vmatpush2.bf16.msra.mxu0 %v1291
    %1436 = vmatprep.subr.bf16.mxu0 %v1290
    %1437 = vmatpush2.bf16.msra.mxu0 %v1289
    %1438 = vmatprep.subr.bf16.mxu0 %v1288
    %1439 = vmatpush2.bf16.msra.mxu0 %v1287
    %1440 = vmatprep.mubr.bf16.mxu0 %v970
    %1441 = vmatmul.mubr.bf16.gmra.mxu0 %v969
    %v1442 = vpop.f32.mrf.mxu0
    %v1443 = vadd.f32 %v1402, %v1442
    %v1444 = vpop.f32.mrf.mxu0
    %v1445 = vadd.f32 %v1404, %v1444
    %v1446 = vpop.f32.mrf.mxu0
    %v1447 = vpop.f32.mrf.mxu0
    %1448 = vdwg.mxu0
    %v1449 = vmax.f32 %v1443, 0.0
    %v1450 = vmax.f32 %v1445, 0.0
    %s1451 = scalar_lea.vmem [#allocation13], 1
    %v1452 = vld [vmem:[%s1451] ss:$4 sm:$0x3]
    %s1453 = scalar_lea.vmem [#allocation13], 2
    %v1454 = vld [vmem:[%s1453] ss:$4 sm:$0x3]
    %v1455 = vrot.slane %v1449, 4
    %v1456 = vadd.f32 %v1449, %v1455
    %v1457 = vrot.slane %v1456, 2
    %v1458 = vadd.f32 %v1456, %v1457
    %v1459 = vrot.slane %v1458, 1
    %v1460 = vadd.f32 %v1458, %v1459
    %v1461 = vrot.slane %v1450, 4
    %v1462 = vadd.f32 %v1450, %v1461
    %v1463 = vrot.slane %v1462, 2
    %v1464 = vadd.f32 %v1462, %v1463
    %v1465 = vrot.slane %v1464, 1
    %v1466 = vadd.f32 %v1464, %v1465
    %v1467 = vmul.f32 %v1460, %v239
    %v1468 = vmul.f32 %v1466, %v239
    %v1469 = vsub.f32 %v1449, %v1467
    %v1470 = vsub.f32 %v1450, %v1468
    %v1471 = vmul.f32 %v1469, %v1469
    %v1472 = vmul.f32 %v1470, %v1470
    %v1473 = vrot.slane %v1471, 4
    %v1474 = vadd.f32 %v1471, %v1473
    %v1475 = vrot.slane %v1474, 2
    %v1476 = vadd.f32 %v1474, %v1475
    %v1477 = vrot.slane %v1476, 1
    %v1478 = vadd.f32 %v1476, %v1477
    %v1479 = vrot.slane %v1472, 4
    %v1480 = vadd.f32 %v1472, %v1479
    %v1481 = vrot.slane %v1480, 2
    %v1482 = vadd.f32 %v1480, %v1481
    %v1483 = vrot.slane %v1482, 1
    %v1484 = vadd.f32 %v1482, %v1483
    %v1485 = vmul.f32 %v1478, %v239
    %v1486 = vmul.f32 %v1484, %v239
    %v1487 = vadd.f32 %v1485, 1e-05
    %v1488 = vadd.f32 %v1486, 1e-05
    %v1489 = vrsqrt.pop %v1487
    %v1490 = vrsqrt.pop %v1488
    %v1493 = vcombine.low %v1489, %v1490
    %v1495 = vunpack.c.l.s4 1966171168
    %v1496 = vunpack.c.0.s8 %v1495
    %v1497 = vlaneseq
    %v1498 = vshrl.u32 %v1497, 7
    %v1499 = vsub.s32 %v1496, %v1498
    %v1500 = vrot.slane %v1493, %v1499
    %v1502 = vunpack.c.l.s4 1966171168
    %v1503 = vunpack.c.0.s8 %v1502
    %v1504 = vlaneseq
    %v1505 = vshrl.u32 %v1504, 7
    %v1506 = vsub.s32 %v1503, %v1505
    %v1507 = vrot.slane %v1500, %v1506
    %v1509 = vmul.f32 %v1452, %v1507
    %v1511 = vlaneseq
    %v1512 = vshrl.u32 %v1511, 7
    %v1513 = vsub.s32 0, %v1512
    %v1514 = vrot.slane %v1509, %v1513
    %v1515 = vlaneseq
    %v1516 = vshrl.u32 %v1515, 7
    %v1517 = vsub.s32 1, %v1516
    %v1518 = vrot.slane %v1509, %v1517
    %v1521 = vmul.f32 %v1469, %v1514
    %v1522 = vmul.f32 %v1470, %v1518
    %v1524 = vlaneseq
    %v1525 = vshrl.u32 %v1524, 7
    %v1526 = vsub.s32 0, %v1525
    %v1527 = vrot.slane %v1454, %v1526
    %v1528 = vlaneseq
    %v1529 = vshrl.u32 %v1528, 7
    %v1530 = vsub.s32 1, %v1529
    %v1531 = vrot.slane %v1454, %v1530
    %v1534 = vadd.f32 %v1521, %v1527
    %v1535 = vadd.f32 %v1522, %v1531
    %v1536 = vpack.c.bf16 %v1534, %v1534
    %v1537 = vpack.c.bf16 %v1535, %v1535
    %v1538 = vld [vmem:[#allocation14] sm:$0xf]
    %v1539 = vld [vmem:[#allocation14 + $0x4] sm:$0xf]
    %v1540 = vld [vmem:[#allocation14 + $0x8] sm:$0xf]
    %v1541 = vld [vmem:[#allocation14 + $0xc] sm:$0xf]
    %v1542 = vld [vmem:[#allocation14 + $0x10] sm:$0xf]
    %v1543 = vld [vmem:[#allocation14 + $0x14] sm:$0xf]
    %v1544 = vld [vmem:[#allocation14 + $0x18] sm:$0xf]
    %v1545 = vld [vmem:[#allocation14 + $0x1c] sm:$0xf]
    %v1546 = vld [vmem:[#allocation14 + $0x20] sm:$0xf]
    %v1547 = vld [vmem:[#allocation14 + $0x24] sm:$0xf]
    %v1548 = vld [vmem:[#allocation14 + $0x28] sm:$0xf]
    %v1549 = vld [vmem:[#allocation14 + $0x2c] sm:$0xf]
    %v1550 = vld [vmem:[#allocation14 + $0x30] sm:$0xf]
    %v1551 = vld [vmem:[#allocation14 + $0x34] sm:$0xf]
    %v1552 = vld [vmem:[#allocation14 + $0x38] sm:$0xf]
    %v1553 = vld [vmem:[#allocation14 + $0x3c] sm:$0xf]
    %v1554 = vld [vmem:[#allocation14 + $0x40] sm:$0xf]
    %v1555 = vld [vmem:[#allocation14 + $0x44] sm:$0xf]
    %v1556 = vld [vmem:[#allocation14 + $0x48] sm:$0xf]
    %v1557 = vld [vmem:[#allocation14 + $0x4c] sm:$0xf]
    %v1558 = vld [vmem:[#allocation14 + $0x50] sm:$0xf]
    %v1559 = vld [vmem:[#allocation14 + $0x54] sm:$0xf]
    %v1560 = vld [vmem:[#allocation14 + $0x58] sm:$0xf]
    %v1561 = vld [vmem:[#allocation14 + $0x5c] sm:$0xf]
    %v1562 = vld [vmem:[#allocation14 + $0x60] sm:$0xf]
    %v1563 = vld [vmem:[#allocation14 + $0x64] sm:$0xf]
    %v1564 = vld [vmem:[#allocation14 + $0x68] sm:$0xf]
    %v1565 = vld [vmem:[#allocation14 + $0x6c] sm:$0xf]
    %v1566 = vld [vmem:[#allocation14 + $0x70] sm:$0xf]
    %v1567 = vld [vmem:[#allocation14 + $0x74] sm:$0xf]
    %v1568 = vld [vmem:[#allocation14 + $0x78] sm:$0xf]
    %v1569 = vld [vmem:[#allocation14 + $0x7c] sm:$0xf]
    %v1570 = vld [vmem:[%s6] sm:$0x1]
    %v1572 = vlaneseq
    %v1573 = vshrl.u32 %v1572, 7
    %v1574 = vsub.s32 0, %v1573
    %v1575 = vrot.slane %v1570, %v1574
    %v1609 = vunpack.c.l.b16 %v1538
    %v1610 = vunpack.c.l.b16 %v1539
    %v1611 = vunpack.c.l.b16 %v1540
    %v1612 = vunpack.c.l.b16 %v1541
    %v1613 = vunpack.c.l.b16 %v1542
    %v1614 = vunpack.c.l.b16 %v1543
    %v1615 = vunpack.c.l.b16 %v1544
    %v1616 = vunpack.c.l.b16 %v1545
    %v1617 = vunpack.c.l.b16 %v1546
    %v1618 = vunpack.c.l.b16 %v1547
    %v1619 = vunpack.c.l.b16 %v1548
    %v1620 = vunpack.c.l.b16 %v1549
    %v1621 = vunpack.c.l.b16 %v1550
    %v1622 = vunpack.c.l.b16 %v1551
    %v1623 = vunpack.c.l.b16 %v1552
    %v1624 = vunpack.c.l.b16 %v1553
    %v1625 = vunpack.c.l.b16 %v1554
    %v1626 = vunpack.c.l.b16 %v1555
    %v1627 = vunpack.c.l.b16 %v1556
    %v1628 = vunpack.c.l.b16 %v1557
    %v1629 = vunpack.c.l.b16 %v1558
    %v1630 = vunpack.c.l.b16 %v1559
    %v1631 = vunpack.c.l.b16 %v1560
    %v1632 = vunpack.c.l.b16 %v1561
    %v1633 = vunpack.c.l.b16 %v1562
    %v1634 = vunpack.c.l.b16 %v1563
    %v1635 = vunpack.c.l.b16 %v1564
    %v1636 = vunpack.c.l.b16 %v1565
    %v1637 = vunpack.c.l.b16 %v1566
    %v1638 = vunpack.c.l.b16 %v1567
    %v1639 = vunpack.c.l.b16 %v1568
    %v1640 = vunpack.c.l.b16 %v1569
    %v1641 = vpack.c.b16 %v1610, %v1609
    %v1642 = vpack.c.b16 %v1612, %v1611
    %v1643 = vpack.c.b16 %v1614, %v1613
    %v1644 = vpack.c.b16 %v1616, %v1615
    %v1645 = vpack.c.b16 %v1618, %v1617
    %v1646 = vpack.c.b16 %v1620, %v1619
    %v1647 = vpack.c.b16 %v1622, %v1621
    %v1648 = vpack.c.b16 %v1624, %v1623
    %v1649 = vpack.c.b16 %v1626, %v1625
    %v1650 = vpack.c.b16 %v1628, %v1627
    %v1651 = vpack.c.b16 %v1630, %v1629
    %v1652 = vpack.c.b16 %v1632, %v1631
    %v1653 = vpack.c.b16 %v1634, %v1633
    %v1654 = vpack.c.b16 %v1636, %v1635
    %v1655 = vpack.c.b16 %v1638, %v1637
    %v1656 = vpack.c.b16 %v1640, %v1639
    %1673 = vmatprep.subr.bf16.mxu0 0
    %1674 = vmatpush1.bf16.msra.mxu0 %v1648
    %1675 = vmatprep.subr.bf16.mxu0 0
    %1676 = vmatpush1.bf16.msra.mxu0 %v1647
    %1677 = vmatprep.subr.bf16.mxu0 0
    %1678 = vmatpush1.bf16.msra.mxu0 %v1646
    %1679 = vmatprep.subr.bf16.mxu0 0
    %1680 = vmatpush1.bf16.msra.mxu0 %v1645
    %1681 = vmatprep.subr.bf16.mxu0 0
    %1682 = vmatpush1.bf16.msra.mxu0 %v1644
    %1683 = vmatprep.subr.bf16.mxu0 0
    %1684 = vmatpush1.bf16.msra.mxu0 %v1643
    %1685 = vmatprep.subr.bf16.mxu0 0
    %1686 = vmatpush1.bf16.msra.mxu0 %v1642
    %1687 = vmatprep.subr.bf16.mxu0 0
    %1688 = vmatpush1.bf16.msra.mxu0 %v1641
    %1689 = vmatprep.subr.bf16.mxu0 0
    %1690 = vmatpush2.bf16.msra.mxu0 %v1656
    %1691 = vmatprep.subr.bf16.mxu0 0
    %1692 = vmatpush2.bf16.msra.mxu0 %v1655
    %1693 = vmatprep.subr.bf16.mxu0 0
    %1694 = vmatpush2.bf16.msra.mxu0 %v1654
    %1695 = vmatprep.subr.bf16.mxu0 0
    %1696 = vmatpush2.bf16.msra.mxu0 %v1653
    %1697 = vmatprep.subr.bf16.mxu0 0
    %1698 = vmatpush2.bf16.msra.mxu0 %v1652
    %1699 = vmatprep.subr.bf16.mxu0 0
    %1700 = vmatpush2.bf16.msra.mxu0 %v1651
    %1701 = vmatprep.subr.bf16.mxu0 0
    %1702 = vmatpush2.bf16.msra.mxu0 %v1650
    %1703 = vmatprep.subr.bf16.mxu0 0
    %1704 = vmatpush2.bf16.msra.mxu0 %v1649
    %1705 = vmatprep.mubr.bf16.mxu0 %v1537
    %1706 = vmatmul.mubr.bf16.gmra.mxu0 %v1536
    %v1707 = vpop.f32.mrf.mxu0
    %v1708 = vadd.f32 %v1575, %v1707
    %v1709 = vpop.f32.mrf.mxu0
    %v1710 = vpop.f32.mrf.mxu0
    %v1711 = vpop.f32.mrf.mxu0
    %1712 = vdwg.mxu0
    %1713 = vst [vmem:[#allocation16] sm:$0xff] %v1708
    // Predicated region
    $region62: #{tpu_custom_call.1} parent=1 // pred_check
      _
    $region63: #{tpu_custom_call.1} parent=1 // pred_check_branch
      %1715 = sbr.rel (0) target = $region65
    $region64: #{tpu_custom_call.1} parent=1 // pred_region
      %s1717 = ssub.s32 128, 128
      %1718 = vsyncadd [#allocation7], %s1717
      %s1720 = sshll.u32 [#allocation16], 4
      %s1721 = int_to_ptr.vmem [resolvable:$true] %s1720
      %1723 = dma.vmem_to_hbm [thread:$0]  %s1721, 128, %s9, [#allocation7]
    $region65: #{tpu_custom_call.1} parent=1 // pred_fallthru
      _
    // Predicated region
    $region66: #{tpu_custom_call.1} parent=1 // pred_check
      _
    $region67: #{tpu_custom_call.1} parent=1 // pred_check_branch
      %1725 = sbr.rel (0) target = $region69
    $region68: #{tpu_custom_call.1} parent=1 // pred_region
      %1726 = dma.done [#allocation7], 128
    $region69: #{tpu_custom_call.1} parent=1 // pred_fallthru
      _
    %1727 = vsyncpa [#allocation6], 1
    %1728 = vsyncpa [#allocation9], 1
    %1729 = vsyncpa [#allocation12], 1
    %1730 = vsyncpa [#allocation15], 1
    %1731 = vsyncpa [#allocation7], 1
  %1732 = vsyncmov [#allocation4]
  %s1733 = vpop.sfrf %1732
  %p1734 = scmp.eq.s32.totalorder %s1733, 0
  %p1735 = pneg %p1734
  %1737 = shalt.err (%p1735)
  %s1738 = scalar_lea.sflag [#allocation4], 1
  %1739 = vsyncmov %s1738
  %s1740 = vpop.sfrf %1739
  %p1741 = scmp.eq.s32.totalorder %s1740, 0
  %p1742 = pneg %p1741
  %1744 = shalt.err (%p1742)

</llo_original>
